<compile_context>
chip_gen: v7x
topology: tpu7x:2x2x1
jax: 0.10.0
libtpu: 0.0.40
codegen_flags: <defaults>
</compile_context>

<pallas_src>
import functools

import jax
import jax.numpy as jnp
from jax.experimental import pallas as pl
from jax.experimental.pallas import tpu as pltpu


# ----------------------------- Pallas kernel -------------------------------
def _stacked_lstm_kernel(*refs, num_layers, hidden_dim, seq_len):
    """All LSTM layers and all timesteps in a single kernel invocation.

    Ref layout:
      inputs : x (seq, emb) bf16, h0 (L, H) f32, c0 (L, H) f32,
               then per layer: W_ih^T (in,4H) bf16, W_hh^T (H,4H) bf16, b (1,4H) f32
      outputs: out (seq, H) f32, h_T (L, H) f32, c_T (L, H) f32
      scratch: gx (seq, 4H) f32   -- hoisted input-projection slab
    """
    n_in = 3 + 3 * num_layers
    x_ref, h0_ref, c0_ref = refs[0], refs[1], refs[2]
    layer_refs = refs[3:n_in]
    out_ref, hT_ref, cT_ref = refs[n_in], refs[n_in + 1], refs[n_in + 2]
    gx_ref = refs[n_in + 3]

    H = hidden_dim

    # Layer 0 input = embeddings; layer l>0 reads the previous layer's full
    # hidden sequence straight out of out_ref (its VMEM buffer doubles as the
    # inter-layer buffer; only the last layer's values survive to HBM).
    x_all = x_ref[...]                                        # bf16 (seq, in_dim)

    for l in range(num_layers):
        wih_ref = layer_refs[3 * l + 0]                       # (in_dim, 4H) bf16
        whh_ref = layer_refs[3 * l + 1]                       # (H, 4H)      bf16
        b_ref = layer_refs[3 * l + 2]                         # (1, 4H)      f32

        # Hoisted input projection for ALL timesteps: one (seq,in)x(in,4H)
        # MXU matmul (fills sublanes; halves the serial matmul count).
        gx_ref[...] = (
            jnp.dot(x_all, wih_ref[...], preferred_element_type=jnp.float32)
            + b_ref[...])

        whh = whh_ref[...]                                    # resident in vregs
        h = h0_ref[pl.ds(l, 1), :]                            # (1, H) f32
        c = c0_ref[pl.ds(l, 1), :]                            # (1, H) f32

        # Fully unrolled static time loop; h/c stay in vregs.
        for t in range(seq_len):
            g = gx_ref[pl.ds(t, 1), :] + jnp.dot(
                h.astype(jnp.bfloat16), whh,
                preferred_element_type=jnp.float32)           # (1, 4H) f32
            # Gate columns were permuted in the wrapper to (i, f, o, g).
            sig = jax.nn.sigmoid(g[:, :3 * H])
            i_g = sig[:, 0 * H:1 * H]
            f_g = sig[:, 1 * H:2 * H]
            o_g = sig[:, 2 * H:3 * H]
            g_g = jnp.tanh(g[:, 3 * H:4 * H])
            c = f_g * c + i_g * g_g
            h = o_g * jnp.tanh(c)
            out_ref[pl.ds(t, 1), :] = h.astype(out_ref.dtype)

        # Final per-layer state, written once (not every timestep).
        hT_ref[pl.ds(l, 1), :] = h.astype(hT_ref.dtype)
        cT_ref[pl.ds(l, 1), :] = c.astype(cT_ref.dtype)

        # Next layer's input is this layer's hidden sequence (already in VMEM).
        # gx for the next layer is computed from it before out_ref is rewritten.
        x_all = out_ref[...].astype(jnp.bfloat16)


# ------------------------------ Module glue --------------------------------
def _prep_layer_weights(w_ih, w_hh, b_ih, b_hh):
    """Permute PyTorch gate blocks (i,f,g,o) -> (i,f,o,g), transpose so the
    kernel computes x @ W^T, cast weights to bf16 (MXU-native), fold biases."""
    def reorder_rows(m):
        i, f, g, o = jnp.split(m, 4, axis=0)
        return jnp.concatenate([i, f, o, g], axis=0)

    wih_t = jnp.transpose(reorder_rows(w_ih)).astype(jnp.bfloat16)   # (in, 4H)
    whh_t = jnp.transpose(reorder_rows(w_hh)).astype(jnp.bfloat16)   # (H, 4H)
    b = (b_ih + b_hh).reshape(4, -1)
    bias = reorder_rows(b).reshape(1, -1).astype(jnp.float32)        # (1, 4H)
    return wih_t, whh_t, bias


def text_encoder_forward(params, text, hidden, *, num_layers, hidden_dim):
    """Matches TextEncoder.forward (eval mode):
        embeds   = word_embeddings(text.view(1, -1))
        lstm_out, hidden = lstm(embeds.view(N, 1, -1), hidden)
        return lstm_out, hidden
    Returns lstm_out (N, 1, H) and hidden = (h_n, c_n), each (L, 1, H).
    """
    flat = text.reshape(-1)
    embeds = params["emb"][flat]                      # (N, E) embedding gather (glue)
    seq_len, emb_dim = embeds.shape
    H = hidden_dim
    h0, c0 = hidden                                   # (L, 1, H) each

    x = embeds.astype(jnp.bfloat16)
    h0_2d = h0[:, 0, :].astype(jnp.float32)           # (L, H)
    c0_2d = c0[:, 0, :].astype(jnp.float32)

    layer_args = []
    flops = 0
    for l in range(num_layers):
        p = params["layers"][l]
        layer_args.extend(
            _prep_layer_weights(p["w_ih"], p["w_hh"], p["b_ih"], p["b_hh"]))
        in_dim = emb_dim if l == 0 else H
        flops += 2 * seq_len * (in_dim + H) * 4 * H

    kernel = functools.partial(
        _stacked_lstm_kernel, num_layers=num_layers, hidden_dim=H,
        seq_len=seq_len)

    n_inputs = 3 + 3 * num_layers
    vmem_spec = pl.BlockSpec(memory_space=pltpu.MemorySpace.VMEM)

    weight_bytes = sum(int(a.size) * a.dtype.itemsize for a in layer_args)
    bytes_accessed = (int(x.size) * 2 + weight_bytes
                      + (seq_len * H + 6 * num_layers * H) * 4)

    out, h_n, c_n = pl.pallas_call(
        kernel,
        out_shape=(
            jax.ShapeDtypeStruct((seq_len, H), jnp.float32),       # h sequence
            jax.ShapeDtypeStruct((num_layers, H), jnp.float32),    # h_T per layer
            jax.ShapeDtypeStruct((num_layers, H), jnp.float32),    # c_T per layer
        ),
        in_specs=[vmem_spec] * n_inputs,
        out_specs=(vmem_spec, vmem_spec, vmem_spec),
        scratch_shapes=[pltpu.VMEM((seq_len, 4 * H), jnp.float32)],
        cost_estimate=pl.CostEstimate(
            flops=flops,
            transcendentals=seq_len * num_layers * 5 * H,
            bytes_accessed=bytes_accessed),
    )(x, h0_2d, c0_2d, *layer_args)

    # TODO(synk): inter-layer dropout (training mode only) is omitted; matches eval().
    lstm_out = out.reshape(seq_len, 1, H)
    return lstm_out, (h_n.reshape(num_layers, 1, H),
                      c_n.reshape(num_layers, 1, H))


def init_text_encoder_params(key, num_layers, hidden_dim, emb_dim, vocab_size):
    """Deterministic parameter init mirroring the PyTorch module's shapes.
    Matrices get an orthogonal init (QR), vectors get a normal init."""
    params = {"emb": None, "layers": []}
    key, k_emb = jax.random.split(key)
    params["emb"] = jax.random.normal(k_emb, (vocab_size, emb_dim), jnp.float32)

    def orthogonal(k, shape):
        a = jax.random.normal(k, (max(shape), max(shape)), jnp.float32)
        q, _ = jnp.linalg.qr(a)
        return q[: shape[0], : shape[1]].astype(jnp.float32)

    for layer in range(num_layers):
        in_dim = emb_dim if layer == 0 else hidden_dim
        key, k1, k2, k3, k4 = jax.random.split(key, 5)
        params["layers"].append({
            "w_ih": orthogonal(k1, (4 * hidden_dim, in_dim)),
            "w_hh": orthogonal(k2, (4 * hidden_dim, hidden_dim)),
            "b_ih": jax.random.normal(k3, (4 * hidden_dim,), jnp.float32),
            "b_hh": jax.random.normal(k4, (4 * hidden_dim,), jnp.float32),
        })
    return params


def init_state(num_layers, batch_sz, hidden_dim):
    return (jnp.zeros((num_layers, batch_sz, hidden_dim), jnp.float32),
            jnp.zeros((num_layers, batch_sz, hidden_dim), jnp.float32))


# --------------------------- pure-JAX reference -----------------------------
def _reference_forward(params, text, hidden, *, num_layers, hidden_dim):
    """Straightforward f32 LSTM with PyTorch gate order (i,f,g,o) for checking."""
    H = hidden_dim
    embeds = params["emb"][text.reshape(-1)]
    h = [hidden[0][l, 0] for l in range(num_layers)]
    c = [hidden[1][l, 0] for l in range(num_layers)]
    x_seq = embeds
    for l in range(num_layers):
        p = params["layers"][l]
        hl, cl = h[l], c[l]
        hs = []
        for t in range(x_seq.shape[0]):
            g = (p["w_ih"] @ x_seq[t] + p["w_hh"] @ hl + p["b_ih"] + p["b_hh"])
            i_g = jax.nn.sigmoid(g[0 * H:1 * H])
            f_g = jax.nn.sigmoid(g[1 * H:2 * H])
            g_g = jnp.tanh(g[2 * H:3 * H])
            o_g = jax.nn.sigmoid(g[3 * H:4 * H])
            cl = f_g * cl + i_g * g_g
            hl = o_g * jnp.tanh(cl)
            hs.append(hl)
        x_seq = jnp.stack(hs)
        h[l], c[l] = hl, cl
    return x_seq, (jnp.stack(h)[:, None, :], jnp.stack(c)[:, None, :])


# --------------------------------- main -------------------------------------
if __name__ == "__main__":
    NUM_LAYERS = 2
    HIDDEN_DIM = 32
    EMB_DIM = 32
    VOCAB = 50
    SEQ = 8

    key = jax.random.PRNGKey(0)
    key, k_text = jax.random.split(key)
    params = init_text_encoder_params(key, NUM_LAYERS, HIDDEN_DIM, EMB_DIM, VOCAB)

    text = jax.random.randint(k_text, (SEQ,), 0, VOCAB, dtype=jnp.int32)
    hidden = init_state(NUM_LAYERS, batch_sz=1, hidden_dim=HIDDEN_DIM)

    fwd = jax.jit(functools.partial(
        text_encoder_forward, num_layers=NUM_LAYERS, hidden_dim=HIDDEN_DIM))
    lstm_out, (h_n, c_n) = fwd(params, text, hidden)
    jax.block_until_ready((lstm_out, h_n, c_n))

    assert lstm_out.shape == (SEQ, 1, HIDDEN_DIM)
    assert h_n.shape == (NUM_LAYERS, 1, HIDDEN_DIM)
    assert c_n.shape == (NUM_LAYERS, 1, HIDDEN_DIM)

    # Numerical check vs. f32 reference (bf16 weights => loose tolerance).
    ref_out, (ref_h, ref_c) = _reference_forward(
        params, text, hidden, num_layers=NUM_LAYERS, hidden_dim=HIDDEN_DIM)
    err = max(
        float(jnp.max(jnp.abs(lstm_out[:, 0, :] - ref_out))),
        float(jnp.max(jnp.abs(h_n - ref_h))),
        float(jnp.max(jnp.abs(c_n - ref_c))),
    )
    assert err < 1e-1, f"mismatch vs reference: {err}"

    print("KERNEL_OK")
</pallas_src>

<mosaic_0001>
module attributes {stable_mosaic.version = 11 : i64} {
  func.func @_stacked_lstm_kernel(%arg0: memref<8x32xbf16, #tpu.memory_space<vmem>>, %arg1: memref<2x32xf32, #tpu.memory_space<vmem>>, %arg2: memref<2x32xf32, #tpu.memory_space<vmem>>, %arg3: memref<32x128xbf16, #tpu.memory_space<vmem>>, %arg4: memref<32x128xbf16, #tpu.memory_space<vmem>>, %arg5: memref<1x128xf32, #tpu.memory_space<vmem>>, %arg6: memref<32x128xbf16, #tpu.memory_space<vmem>>, %arg7: memref<32x128xbf16, #tpu.memory_space<vmem>>, %arg8: memref<1x128xf32, #tpu.memory_space<vmem>>, %arg9: memref<8x32xf32, #tpu.memory_space<vmem>>, %arg10: memref<2x32xf32, #tpu.memory_space<vmem>>, %arg11: memref<2x32xf32, #tpu.memory_space<vmem>>, %arg12: memref<8x128xf32, #tpu.memory_space<vmem>>) attributes {dimension_semantics = [], scalar_prefetch = 0 : i64, scratch_operands = 1 : i64, tpu.core_type = #tpu.core_type<tc>} {
    %c0 = arith.constant 0 : index
    %c0_0 = arith.constant 0 : index
    %0 = vector.load %arg0[%c0, %c0_0] : memref<8x32xbf16, #tpu.memory_space<vmem>>, vector<8x32xbf16>
    %c0_1 = arith.constant 0 : index
    %c0_2 = arith.constant 0 : index
    %1 = vector.load %arg3[%c0_1, %c0_2] : memref<32x128xbf16, #tpu.memory_space<vmem>>, vector<32x128xbf16>
    %cst = arith.constant dense<0.000000e+00> : vector<8x128xf32>
    %2 = tpu.matmul %0, %1, %cst {dimension_numbers = #tpu.dot_dimension_numbers<[1], [0], [0], [1], [0, 0, 1, 1], [], []>} : vector<8x32xbf16>, vector<32x128xbf16>, vector<8x128xf32> -> vector<8x128xf32>
    %c0_3 = arith.constant 0 : index
    %c0_4 = arith.constant 0 : index
    %3 = vector.load %arg5[%c0_3, %c0_4] : memref<1x128xf32, #tpu.memory_space<vmem>>, vector<1x128xf32>
    %4 = vector.broadcast %3 : vector<1x128xf32> to vector<8x128xf32>
    %5 = arith.addf %2, %4 : vector<8x128xf32>
    %c0_5 = arith.constant 0 : index
    %c0_6 = arith.constant 0 : index
    %6 = vector.load %arg12[%c0_5, %c0_6] : memref<8x128xf32, #tpu.memory_space<vmem>>, vector<8x128xf32>
    tpu.vector_store %arg12[%c0_5, %c0_6], %5 {strides = array<i32>} : memref<8x128xf32, #tpu.memory_space<vmem>>, vector<8x128xf32>,
    %c0_7 = arith.constant 0 : index
    %c0_8 = arith.constant 0 : index
    %7 = vector.load %arg4[%c0_7, %c0_8] : memref<32x128xbf16, #tpu.memory_space<vmem>>, vector<32x128xbf16>
    %c0_9 = arith.constant 0 : index
    %c0_10 = arith.constant 0 : index
    %8 = vector.load %arg1[%c0_9, %c0_10] : memref<2x32xf32, #tpu.memory_space<vmem>>, vector<1x32xf32>
    %c0_11 = arith.constant 0 : index
    %c0_12 = arith.constant 0 : index
    %9 = vector.load %arg2[%c0_11, %c0_12] : memref<2x32xf32, #tpu.memory_space<vmem>>, vector<1x32xf32>
    %c0_13 = arith.constant 0 : index
    %c0_14 = arith.constant 0 : index
    %10 = vector.load %arg12[%c0_13, %c0_14] : memref<8x128xf32, #tpu.memory_space<vmem>>, vector<1x128xf32>
    %11 = arith.truncf %8 : vector<1x32xf32> to vector<1x32xbf16>
    %cst_15 = arith.constant dense<0.000000e+00> : vector<1x128xf32>
    %12 = tpu.matmul %11, %7, %cst_15 {dimension_numbers = #tpu.dot_dimension_numbers<[1], [0], [0], [1], [0, 0, 1, 1], [], []>} : vector<1x32xbf16>, vector<32x128xbf16>, vector<1x128xf32> -> vector<1x128xf32>
    %13 = arith.addf %10, %12 : vector<1x128xf32>
    %14 = vector.extract_strided_slice %13 {offsets = [0, 0], sizes = [1, 96], strides = [1, 1]} : vector<1x128xf32> to vector<1x96xf32>
    %15 = arith.negf %14 : vector<1x96xf32>
    %16 = math.exp %15 : vector<1x96xf32>
    %cst_16 = arith.constant 1.000000e+00 : f32
    %17 = vector.broadcast %cst_16 : f32 to vector<1x96xf32>
    %18 = arith.addf %17, %16 : vector<1x96xf32>
    %19 = arith.divf %17, %18 : vector<1x96xf32>
    %20 = vector.extract_strided_slice %19 {offsets = [0, 0], sizes = [1, 32], strides = [1, 1]} : vector<1x96xf32> to vector<1x32xf32>
    %21 = vector.extract_strided_slice %19 {offsets = [0, 32], sizes = [1, 32], strides = [1, 1]} : vector<1x96xf32> to vector<1x32xf32>
    %22 = vector.extract_strided_slice %19 {offsets = [0, 64], sizes = [1, 32], strides = [1, 1]} : vector<1x96xf32> to vector<1x32xf32>
    %23 = vector.extract_strided_slice %13 {offsets = [0, 96], sizes = [1, 32], strides = [1, 1]} : vector<1x128xf32> to vector<1x32xf32>
    %24 = math.tanh %23 : vector<1x32xf32>
    %25 = arith.mulf %21, %9 : vector<1x32xf32>
    %26 = arith.mulf %20, %24 : vector<1x32xf32>
    %27 = arith.addf %25, %26 : vector<1x32xf32>
    %28 = math.tanh %27 : vector<1x32xf32>
    %29 = arith.mulf %22, %28 : vector<1x32xf32>
    %c0_17 = arith.constant 0 : index
    %c0_18 = arith.constant 0 : index
    %30 = vector.load %arg9[%c0_17, %c0_18] : memref<8x32xf32, #tpu.memory_space<vmem>>, vector<1x32xf32>
    tpu.vector_store %arg9[%c0_17, %c0_18], %29 {strides = array<i32>} : memref<8x32xf32, #tpu.memory_space<vmem>>, vector<1x32xf32>,
    %c1 = arith.constant 1 : index
    %c0_19 = arith.constant 0 : index
    %31 = vector.load %arg12[%c1, %c0_19] : memref<8x128xf32, #tpu.memory_space<vmem>>, vector<1x128xf32>
    %32 = arith.truncf %29 : vector<1x32xf32> to vector<1x32xbf16>
    %cst_20 = arith.constant dense<0.000000e+00> : vector<1x128xf32>
    %33 = tpu.matmul %32, %7, %cst_20 {dimension_numbers = #tpu.dot_dimension_numbers<[1], [0], [0], [1], [0, 0, 1, 1], [], []>} : vector<1x32xbf16>, vector<32x128xbf16>, vector<1x128xf32> -> vector<1x128xf32>
    %34 = arith.addf %31, %33 : vector<1x128xf32>
    %35 = vector.extract_strided_slice %34 {offsets = [0, 0], sizes = [1, 96], strides = [1, 1]} : vector<1x128xf32> to vector<1x96xf32>
    %36 = arith.negf %35 : vector<1x96xf32>
    %37 = math.exp %36 : vector<1x96xf32>
    %cst_21 = arith.constant 1.000000e+00 : f32
    %38 = vector.broadcast %cst_21 : f32 to vector<1x96xf32>
    %39 = arith.addf %38, %37 : vector<1x96xf32>
    %40 = arith.divf %38, %39 : vector<1x96xf32>
    %41 = vector.extract_strided_slice %40 {offsets = [0, 0], sizes = [1, 32], strides = [1, 1]} : vector<1x96xf32> to vector<1x32xf32>
    %42 = vector.extract_strided_slice %40 {offsets = [0, 32], sizes = [1, 32], strides = [1, 1]} : vector<1x96xf32> to vector<1x32xf32>
    %43 = vector.extract_strided_slice %40 {offsets = [0, 64], sizes = [1, 32], strides = [1, 1]} : vector<1x96xf32> to vector<1x32xf32>
    %44 = vector.extract_strided_slice %34 {offsets = [0, 96], sizes = [1, 32], strides = [1, 1]} : vector<1x128xf32> to vector<1x32xf32>
    %45 = math.tanh %44 : vector<1x32xf32>
    %46 = arith.mulf %42, %27 : vector<1x32xf32>
    %47 = arith.mulf %41, %45 : vector<1x32xf32>
    %48 = arith.addf %46, %47 : vector<1x32xf32>
    %49 = math.tanh %48 : vector<1x32xf32>
    %50 = arith.mulf %43, %49 : vector<1x32xf32>
    %c1_22 = arith.constant 1 : index
    %c0_23 = arith.constant 0 : index
    %51 = vector.load %arg9[%c1_22, %c0_23] : memref<8x32xf32, #tpu.memory_space<vmem>>, vector<1x32xf32>
    tpu.vector_store %arg9[%c1_22, %c0_23], %50 {strides = array<i32>} : memref<8x32xf32, #tpu.memory_space<vmem>>, vector<1x32xf32>,
    %c2 = arith.constant 2 : index
    %c0_24 = arith.constant 0 : index
    %52 = vector.load %arg12[%c2, %c0_24] : memref<8x128xf32, #tpu.memory_space<vmem>>, vector<1x128xf32>
    %53 = arith.truncf %50 : vector<1x32xf32> to vector<1x32xbf16>
    %cst_25 = arith.constant dense<0.000000e+00> : vector<1x128xf32>
    %54 = tpu.matmul %53, %7, %cst_25 {dimension_numbers = #tpu.dot_dimension_numbers<[1], [0], [0], [1], [0, 0, 1, 1], [], []>} : vector<1x32xbf16>, vector<32x128xbf16>, vector<1x128xf32> -> vector<1x128xf32>
    %55 = arith.addf %52, %54 : vector<1x128xf32>
    %56 = vector.extract_strided_slice %55 {offsets = [0, 0], sizes = [1, 96], strides = [1, 1]} : vector<1x128xf32> to vector<1x96xf32>
    %57 = arith.negf %56 : vector<1x96xf32>
    %58 = math.exp %57 : vector<1x96xf32>
    %cst_26 = arith.constant 1.000000e+00 : f32
    %59 = vector.broadcast %cst_26 : f32 to vector<1x96xf32>
    %60 = arith.addf %59, %58 : vector<1x96xf32>
    %61 = arith.divf %59, %60 : vector<1x96xf32>
    %62 = vector.extract_strided_slice %61 {offsets = [0, 0], sizes = [1, 32], strides = [1, 1]} : vector<1x96xf32> to vector<1x32xf32>
    %63 = vector.extract_strided_slice %61 {offsets = [0, 32], sizes = [1, 32], strides = [1, 1]} : vector<1x96xf32> to vector<1x32xf32>
    %64 = vector.extract_strided_slice %61 {offsets = [0, 64], sizes = [1, 32], strides = [1, 1]} : vector<1x96xf32> to vector<1x32xf32>
    %65 = vector.extract_strided_slice %55 {offsets = [0, 96], sizes = [1, 32], strides = [1, 1]} : vector<1x128xf32> to vector<1x32xf32>
    %66 = math.tanh %65 : vector<1x32xf32>
    %67 = arith.mulf %63, %48 : vector<1x32xf32>
    %68 = arith.mulf %62, %66 : vector<1x32xf32>
    %69 = arith.addf %67, %68 : vector<1x32xf32>
    %70 = math.tanh %69 : vector<1x32xf32>
    %71 = arith.mulf %64, %70 : vector<1x32xf32>
    %c2_27 = arith.constant 2 : index
    %c0_28 = arith.constant 0 : index
    %72 = vector.load %arg9[%c2_27, %c0_28] : memref<8x32xf32, #tpu.memory_space<vmem>>, vector<1x32xf32>
    tpu.vector_store %arg9[%c2_27, %c0_28], %71 {strides = array<i32>} : memref<8x32xf32, #tpu.memory_space<vmem>>, vector<1x32xf32>,
    %c3 = arith.constant 3 : index
    %c0_29 = arith.constant 0 : index
    %73 = vector.load %arg12[%c3, %c0_29] : memref<8x128xf32, #tpu.memory_space<vmem>>, vector<1x128xf32>
    %74 = arith.truncf %71 : vector<1x32xf32> to vector<1x32xbf16>
    %cst_30 = arith.constant dense<0.000000e+00> : vector<1x128xf32>
    %75 = tpu.matmul %74, %7, %cst_30 {dimension_numbers = #tpu.dot_dimension_numbers<[1], [0], [0], [1], [0, 0, 1, 1], [], []>} : vector<1x32xbf16>, vector<32x128xbf16>, vector<1x128xf32> -> vector<1x128xf32>
    %76 = arith.addf %73, %75 : vector<1x128xf32>
    %77 = vector.extract_strided_slice %76 {offsets = [0, 0], sizes = [1, 96], strides = [1, 1]} : vector<1x128xf32> to vector<1x96xf32>
    %78 = arith.negf %77 : vector<1x96xf32>
    %79 = math.exp %78 : vector<1x96xf32>
    %cst_31 = arith.constant 1.000000e+00 : f32
    %80 = vector.broadcast %cst_31 : f32 to vector<1x96xf32>
    %81 = arith.addf %80, %79 : vector<1x96xf32>
    %82 = arith.divf %80, %81 : vector<1x96xf32>
    %83 = vector.extract_strided_slice %82 {offsets = [0, 0], sizes = [1, 32], strides = [1, 1]} : vector<1x96xf32> to vector<1x32xf32>
    %84 = vector.extract_strided_slice %82 {offsets = [0, 32], sizes = [1, 32], strides = [1, 1]} : vector<1x96xf32> to vector<1x32xf32>
    %85 = vector.extract_strided_slice %82 {offsets = [0, 64], sizes = [1, 32], strides = [1, 1]} : vector<1x96xf32> to vector<1x32xf32>
    %86 = vector.extract_strided_slice %76 {offsets = [0, 96], sizes = [1, 32], strides = [1, 1]} : vector<1x128xf32> to vector<1x32xf32>
    %87 = math.tanh %86 : vector<1x32xf32>
    %88 = arith.mulf %84, %69 : vector<1x32xf32>
    %89 = arith.mulf %83, %87 : vector<1x32xf32>
    %90 = arith.addf %88, %89 : vector<1x32xf32>
    %91 = math.tanh %90 : vector<1x32xf32>
    %92 = arith.mulf %85, %91 : vector<1x32xf32>
    %c3_32 = arith.constant 3 : index
    %c0_33 = arith.constant 0 : index
    %93 = vector.load %arg9[%c3_32, %c0_33] : memref<8x32xf32, #tpu.memory_space<vmem>>, vector<1x32xf32>
    tpu.vector_store %arg9[%c3_32, %c0_33], %92 {strides = array<i32>} : memref<8x32xf32, #tpu.memory_space<vmem>>, vector<1x32xf32>,
    %c4 = arith.constant 4 : index
    %c0_34 = arith.constant 0 : index
    %94 = vector.load %arg12[%c4, %c0_34] : memref<8x128xf32, #tpu.memory_space<vmem>>, vector<1x128xf32>
    %95 = arith.truncf %92 : vector<1x32xf32> to vector<1x32xbf16>
    %cst_35 = arith.constant dense<0.000000e+00> : vector<1x128xf32>
    %96 = tpu.matmul %95, %7, %cst_35 {dimension_numbers = #tpu.dot_dimension_numbers<[1], [0], [0], [1], [0, 0, 1, 1], [], []>} : vector<1x32xbf16>, vector<32x128xbf16>, vector<1x128xf32> -> vector<1x128xf32>
    %97 = arith.addf %94, %96 : vector<1x128xf32>
    %98 = vector.extract_strided_slice %97 {offsets = [0, 0], sizes = [1, 96], strides = [1, 1]} : vector<1x128xf32> to vector<1x96xf32>
    %99 = arith.negf %98 : vector<1x96xf32>
    %100 = math.exp %99 : vector<1x96xf32>
    %cst_36 = arith.constant 1.000000e+00 : f32
    %101 = vector.broadcast %cst_36 : f32 to vector<1x96xf32>
    %102 = arith.addf %101, %100 : vector<1x96xf32>
    %103 = arith.divf %101, %102 : vector<1x96xf32>
    %104 = vector.extract_strided_slice %103 {offsets = [0, 0], sizes = [1, 32], strides = [1, 1]} : vector<1x96xf32> to vector<1x32xf32>
    %105 = vector.extract_strided_slice %103 {offsets = [0, 32], sizes = [1, 32], strides = [1, 1]} : vector<1x96xf32> to vector<1x32xf32>
    %106 = vector.extract_strided_slice %103 {offsets = [0, 64], sizes = [1, 32], strides = [1, 1]} : vector<1x96xf32> to vector<1x32xf32>
    %107 = vector.extract_strided_slice %97 {offsets = [0, 96], sizes = [1, 32], strides = [1, 1]} : vector<1x128xf32> to vector<1x32xf32>
    %108 = math.tanh %107 : vector<1x32xf32>
    %109 = arith.mulf %105, %90 : vector<1x32xf32>
    %110 = arith.mulf %104, %108 : vector<1x32xf32>
    %111 = arith.addf %109, %110 : vector<1x32xf32>
    %112 = math.tanh %111 : vector<1x32xf32>
    %113 = arith.mulf %106, %112 : vector<1x32xf32>
    %c4_37 = arith.constant 4 : index
    %c0_38 = arith.constant 0 : index
    %114 = vector.load %arg9[%c4_37, %c0_38] : memref<8x32xf32, #tpu.memory_space<vmem>>, vector<1x32xf32>
    tpu.vector_store %arg9[%c4_37, %c0_38], %113 {strides = array<i32>} : memref<8x32xf32, #tpu.memory_space<vmem>>, vector<1x32xf32>,
    %c5 = arith.constant 5 : index
    %c0_39 = arith.constant 0 : index
    %115 = vector.load %arg12[%c5, %c0_39] : memref<8x128xf32, #tpu.memory_space<vmem>>, vector<1x128xf32>
    %116 = arith.truncf %113 : vector<1x32xf32> to vector<1x32xbf16>
    %cst_40 = arith.constant dense<0.000000e+00> : vector<1x128xf32>
    %117 = tpu.matmul %116, %7, %cst_40 {dimension_numbers = #tpu.dot_dimension_numbers<[1], [0], [0], [1], [0, 0, 1, 1], [], []>} : vector<1x32xbf16>, vector<32x128xbf16>, vector<1x128xf32> -> vector<1x128xf32>
    %118 = arith.addf %115, %117 : vector<1x128xf32>
    %119 = vector.extract_strided_slice %118 {offsets = [0, 0], sizes = [1, 96], strides = [1, 1]} : vector<1x128xf32> to vector<1x96xf32>
    %120 = arith.negf %119 : vector<1x96xf32>
    %121 = math.exp %120 : vector<1x96xf32>
    %cst_41 = arith.constant 1.000000e+00 : f32
    %122 = vector.broadcast %cst_41 : f32 to vector<1x96xf32>
    %123 = arith.addf %122, %121 : vector<1x96xf32>
    %124 = arith.divf %122, %123 : vector<1x96xf32>
    %125 = vector.extract_strided_slice %124 {offsets = [0, 0], sizes = [1, 32], strides = [1, 1]} : vector<1x96xf32> to vector<1x32xf32>
    %126 = vector.extract_strided_slice %124 {offsets = [0, 32], sizes = [1, 32], strides = [1, 1]} : vector<1x96xf32> to vector<1x32xf32>
    %127 = vector.extract_strided_slice %124 {offsets = [0, 64], sizes = [1, 32], strides = [1, 1]} : vector<1x96xf32> to vector<1x32xf32>
    %128 = vector.extract_strided_slice %118 {offsets = [0, 96], sizes = [1, 32], strides = [1, 1]} : vector<1x128xf32> to vector<1x32xf32>
    %129 = math.tanh %128 : vector<1x32xf32>
    %130 = arith.mulf %126, %111 : vector<1x32xf32>
    %131 = arith.mulf %125, %129 : vector<1x32xf32>
    %132 = arith.addf %130, %131 : vector<1x32xf32>
    %133 = math.tanh %132 : vector<1x32xf32>
    %134 = arith.mulf %127, %133 : vector<1x32xf32>
    %c5_42 = arith.constant 5 : index
    %c0_43 = arith.constant 0 : index
    %135 = vector.load %arg9[%c5_42, %c0_43] : memref<8x32xf32, #tpu.memory_space<vmem>>, vector<1x32xf32>
    tpu.vector_store %arg9[%c5_42, %c0_43], %134 {strides = array<i32>} : memref<8x32xf32, #tpu.memory_space<vmem>>, vector<1x32xf32>,
    %c6 = arith.constant 6 : index
    %c0_44 = arith.constant 0 : index
    %136 = vector.load %arg12[%c6, %c0_44] : memref<8x128xf32, #tpu.memory_space<vmem>>, vector<1x128xf32>
    %137 = arith.truncf %134 : vector<1x32xf32> to vector<1x32xbf16>
    %cst_45 = arith.constant dense<0.000000e+00> : vector<1x128xf32>
    %138 = tpu.matmul %137, %7, %cst_45 {dimension_numbers = #tpu.dot_dimension_numbers<[1], [0], [0], [1], [0, 0, 1, 1], [], []>} : vector<1x32xbf16>, vector<32x128xbf16>, vector<1x128xf32> -> vector<1x128xf32>
    %139 = arith.addf %136, %138 : vector<1x128xf32>
    %140 = vector.extract_strided_slice %139 {offsets = [0, 0], sizes = [1, 96], strides = [1, 1]} : vector<1x128xf32> to vector<1x96xf32>
    %141 = arith.negf %140 : vector<1x96xf32>
    %142 = math.exp %141 : vector<1x96xf32>
    %cst_46 = arith.constant 1.000000e+00 : f32
    %143 = vector.broadcast %cst_46 : f32 to vector<1x96xf32>
    %144 = arith.addf %143, %142 : vector<1x96xf32>
    %145 = arith.divf %143, %144 : vector<1x96xf32>
    %146 = vector.extract_strided_slice %145 {offsets = [0, 0], sizes = [1, 32], strides = [1, 1]} : vector<1x96xf32> to vector<1x32xf32>
    %147 = vector.extract_strided_slice %145 {offsets = [0, 32], sizes = [1, 32], strides = [1, 1]} : vector<1x96xf32> to vector<1x32xf32>
    %148 = vector.extract_strided_slice %145 {offsets = [0, 64], sizes = [1, 32], strides = [1, 1]} : vector<1x96xf32> to vector<1x32xf32>
    %149 = vector.extract_strided_slice %139 {offsets = [0, 96], sizes = [1, 32], strides = [1, 1]} : vector<1x128xf32> to vector<1x32xf32>
    %150 = math.tanh %149 : vector<1x32xf32>
    %151 = arith.mulf %147, %132 : vector<1x32xf32>
    %152 = arith.mulf %146, %150 : vector<1x32xf32>
    %153 = arith.addf %151, %152 : vector<1x32xf32>
    %154 = math.tanh %153 : vector<1x32xf32>
    %155 = arith.mulf %148, %154 : vector<1x32xf32>
    %c6_47 = arith.constant 6 : index
    %c0_48 = arith.constant 0 : index
    %156 = vector.load %arg9[%c6_47, %c0_48] : memref<8x32xf32, #tpu.memory_space<vmem>>, vector<1x32xf32>
    tpu.vector_store %arg9[%c6_47, %c0_48], %155 {strides = array<i32>} : memref<8x32xf32, #tpu.memory_space<vmem>>, vector<1x32xf32>,
    %c7 = arith.constant 7 : index
    %c0_49 = arith.constant 0 : index
    %157 = vector.load %arg12[%c7, %c0_49] : memref<8x128xf32, #tpu.memory_space<vmem>>, vector<1x128xf32>
    %158 = arith.truncf %155 : vector<1x32xf32> to vector<1x32xbf16>
    %cst_50 = arith.constant dense<0.000000e+00> : vector<1x128xf32>
    %159 = tpu.matmul %158, %7, %cst_50 {dimension_numbers = #tpu.dot_dimension_numbers<[1], [0], [0], [1], [0, 0, 1, 1], [], []>} : vector<1x32xbf16>, vector<32x128xbf16>, vector<1x128xf32> -> vector<1x128xf32>
    %160 = arith.addf %157, %159 : vector<1x128xf32>
    %161 = vector.extract_strided_slice %160 {offsets = [0, 0], sizes = [1, 96], strides = [1, 1]} : vector<1x128xf32> to vector<1x96xf32>
    %162 = arith.negf %161 : vector<1x96xf32>
    %163 = math.exp %162 : vector<1x96xf32>
    %cst_51 = arith.constant 1.000000e+00 : f32
    %164 = vector.broadcast %cst_51 : f32 to vector<1x96xf32>
    %165 = arith.addf %164, %163 : vector<1x96xf32>
    %166 = arith.divf %164, %165 : vector<1x96xf32>
    %167 = vector.extract_strided_slice %166 {offsets = [0, 0], sizes = [1, 32], strides = [1, 1]} : vector<1x96xf32> to vector<1x32xf32>
    %168 = vector.extract_strided_slice %166 {offsets = [0, 32], sizes = [1, 32], strides = [1, 1]} : vector<1x96xf32> to vector<1x32xf32>
    %169 = vector.extract_strided_slice %166 {offsets = [0, 64], sizes = [1, 32], strides = [1, 1]} : vector<1x96xf32> to vector<1x32xf32>
    %170 = vector.extract_strided_slice %160 {offsets = [0, 96], sizes = [1, 32], strides = [1, 1]} : vector<1x128xf32> to vector<1x32xf32>
    %171 = math.tanh %170 : vector<1x32xf32>
    %172 = arith.mulf %168, %153 : vector<1x32xf32>
    %173 = arith.mulf %167, %171 : vector<1x32xf32>
    %174 = arith.addf %172, %173 : vector<1x32xf32>
    %175 = math.tanh %174 : vector<1x32xf32>
    %176 = arith.mulf %169, %175 : vector<1x32xf32>
    %c7_52 = arith.constant 7 : index
    %c0_53 = arith.constant 0 : index
    %177 = vector.load %arg9[%c7_52, %c0_53] : memref<8x32xf32, #tpu.memory_space<vmem>>, vector<1x32xf32>
    tpu.vector_store %arg9[%c7_52, %c0_53], %176 {strides = array<i32>} : memref<8x32xf32, #tpu.memory_space<vmem>>, vector<1x32xf32>,
    %c0_54 = arith.constant 0 : index
    %c0_55 = arith.constant 0 : index
    %178 = vector.load %arg10[%c0_54, %c0_55] : memref<2x32xf32, #tpu.memory_space<vmem>>, vector<1x32xf32>
    tpu.vector_store %arg10[%c0_54, %c0_55], %176 {strides = array<i32>} : memref<2x32xf32, #tpu.memory_space<vmem>>, vector<1x32xf32>,
    %c0_56 = arith.constant 0 : index
    %c0_57 = arith.constant 0 : index
    %179 = vector.load %arg11[%c0_56, %c0_57] : memref<2x32xf32, #tpu.memory_space<vmem>>, vector<1x32xf32>
    tpu.vector_store %arg11[%c0_56, %c0_57], %174 {strides = array<i32>} : memref<2x32xf32, #tpu.memory_space<vmem>>, vector<1x32xf32>,
    %c0_58 = arith.constant 0 : index
    %c0_59 = arith.constant 0 : index
    %180 = vector.load %arg9[%c0_58, %c0_59] : memref<8x32xf32, #tpu.memory_space<vmem>>, vector<8x32xf32>
    %181 = arith.truncf %180 : vector<8x32xf32> to vector<8x32xbf16>
    %c0_60 = arith.constant 0 : index
    %c0_61 = arith.constant 0 : index
    %182 = vector.load %arg6[%c0_60, %c0_61] : memref<32x128xbf16, #tpu.memory_space<vmem>>, vector<32x128xbf16>
    %cst_62 = arith.constant dense<0.000000e+00> : vector<8x128xf32>
    %183 = tpu.matmul %181, %182, %cst_62 {dimension_numbers = #tpu.dot_dimension_numbers<[1], [0], [0], [1], [0, 0, 1, 1], [], []>} : vector<8x32xbf16>, vector<32x128xbf16>, vector<8x128xf32> -> vector<8x128xf32>
    %c0_63 = arith.constant 0 : index
    %c0_64 = arith.constant 0 : index
    %184 = vector.load %arg8[%c0_63, %c0_64] : memref<1x128xf32, #tpu.memory_space<vmem>>, vector<1x128xf32>
    %185 = vector.broadcast %184 : vector<1x128xf32> to vector<8x128xf32>
    %186 = arith.addf %183, %185 : vector<8x128xf32>
    %c0_65 = arith.constant 0 : index
    %c0_66 = arith.constant 0 : index
    %187 = vector.load %arg12[%c0_65, %c0_66] : memref<8x128xf32, #tpu.memory_space<vmem>>, vector<8x128xf32>
    tpu.vector_store %arg12[%c0_65, %c0_66], %186 {strides = array<i32>} : memref<8x128xf32, #tpu.memory_space<vmem>>, vector<8x128xf32>,
    %c0_67 = arith.constant 0 : index
    %c0_68 = arith.constant 0 : index
    %188 = vector.load %arg7[%c0_67, %c0_68] : memref<32x128xbf16, #tpu.memory_space<vmem>>, vector<32x128xbf16>
    %c1_69 = arith.constant 1 : index
    %c0_70 = arith.constant 0 : index
    %189 = vector.load %arg1[%c1_69, %c0_70] : memref<2x32xf32, #tpu.memory_space<vmem>>, vector<1x32xf32>
    %c1_71 = arith.constant 1 : index
    %c0_72 = arith.constant 0 : index
    %190 = vector.load %arg2[%c1_71, %c0_72] : memref<2x32xf32, #tpu.memory_space<vmem>>, vector<1x32xf32>
    %c0_73 = arith.constant 0 : index
    %c0_74 = arith.constant 0 : index
    %191 = vector.load %arg12[%c0_73, %c0_74] : memref<8x128xf32, #tpu.memory_space<vmem>>, vector<1x128xf32>
    %192 = arith.truncf %189 : vector<1x32xf32> to vector<1x32xbf16>
    %cst_75 = arith.constant dense<0.000000e+00> : vector<1x128xf32>
    %193 = tpu.matmul %192, %188, %cst_75 {dimension_numbers = #tpu.dot_dimension_numbers<[1], [0], [0], [1], [0, 0, 1, 1], [], []>} : vector<1x32xbf16>, vector<32x128xbf16>, vector<1x128xf32> -> vector<1x128xf32>
    %194 = arith.addf %191, %193 : vector<1x128xf32>
    %195 = vector.extract_strided_slice %194 {offsets = [0, 0], sizes = [1, 96], strides = [1, 1]} : vector<1x128xf32> to vector<1x96xf32>
    %196 = arith.negf %195 : vector<1x96xf32>
    %197 = math.exp %196 : vector<1x96xf32>
    %cst_76 = arith.constant 1.000000e+00 : f32
    %198 = vector.broadcast %cst_76 : f32 to vector<1x96xf32>
    %199 = arith.addf %198, %197 : vector<1x96xf32>
    %200 = arith.divf %198, %199 : vector<1x96xf32>
    %201 = vector.extract_strided_slice %200 {offsets = [0, 0], sizes = [1, 32], strides = [1, 1]} : vector<1x96xf32> to vector<1x32xf32>
    %202 = vector.extract_strided_slice %200 {offsets = [0, 32], sizes = [1, 32], strides = [1, 1]} : vector<1x96xf32> to vector<1x32xf32>
    %203 = vector.extract_strided_slice %200 {offsets = [0, 64], sizes = [1, 32], strides = [1, 1]} : vector<1x96xf32> to vector<1x32xf32>
    %204 = vector.extract_strided_slice %194 {offsets = [0, 96], sizes = [1, 32], strides = [1, 1]} : vector<1x128xf32> to vector<1x32xf32>
    %205 = math.tanh %204 : vector<1x32xf32>
    %206 = arith.mulf %202, %190 : vector<1x32xf32>
    %207 = arith.mulf %201, %205 : vector<1x32xf32>
    %208 = arith.addf %206, %207 : vector<1x32xf32>
    %209 = math.tanh %208 : vector<1x32xf32>
    %210 = arith.mulf %203, %209 : vector<1x32xf32>
    %c0_77 = arith.constant 0 : index
    %c0_78 = arith.constant 0 : index
    %211 = vector.load %arg9[%c0_77, %c0_78] : memref<8x32xf32, #tpu.memory_space<vmem>>, vector<1x32xf32>
    tpu.vector_store %arg9[%c0_77, %c0_78], %210 {strides = array<i32>} : memref<8x32xf32, #tpu.memory_space<vmem>>, vector<1x32xf32>,
    %c1_79 = arith.constant 1 : index
    %c0_80 = arith.constant 0 : index
    %212 = vector.load %arg12[%c1_79, %c0_80] : memref<8x128xf32, #tpu.memory_space<vmem>>, vector<1x128xf32>
    %213 = arith.truncf %210 : vector<1x32xf32> to vector<1x32xbf16>
    %cst_81 = arith.constant dense<0.000000e+00> : vector<1x128xf32>
    %214 = tpu.matmul %213, %188, %cst_81 {dimension_numbers = #tpu.dot_dimension_numbers<[1], [0], [0], [1], [0, 0, 1, 1], [], []>} : vector<1x32xbf16>, vector<32x128xbf16>, vector<1x128xf32> -> vector<1x128xf32>
    %215 = arith.addf %212, %214 : vector<1x128xf32>
    %216 = vector.extract_strided_slice %215 {offsets = [0, 0], sizes = [1, 96], strides = [1, 1]} : vector<1x128xf32> to vector<1x96xf32>
    %217 = arith.negf %216 : vector<1x96xf32>
    %218 = math.exp %217 : vector<1x96xf32>
    %cst_82 = arith.constant 1.000000e+00 : f32
    %219 = vector.broadcast %cst_82 : f32 to vector<1x96xf32>
    %220 = arith.addf %219, %218 : vector<1x96xf32>
    %221 = arith.divf %219, %220 : vector<1x96xf32>
    %222 = vector.extract_strided_slice %221 {offsets = [0, 0], sizes = [1, 32], strides = [1, 1]} : vector<1x96xf32> to vector<1x32xf32>
    %223 = vector.extract_strided_slice %221 {offsets = [0, 32], sizes = [1, 32], strides = [1, 1]} : vector<1x96xf32> to vector<1x32xf32>
    %224 = vector.extract_strided_slice %221 {offsets = [0, 64], sizes = [1, 32], strides = [1, 1]} : vector<1x96xf32> to vector<1x32xf32>
    %225 = vector.extract_strided_slice %215 {offsets = [0, 96], sizes = [1, 32], strides = [1, 1]} : vector<1x128xf32> to vector<1x32xf32>
    %226 = math.tanh %225 : vector<1x32xf32>
    %227 = arith.mulf %223, %208 : vector<1x32xf32>
    %228 = arith.mulf %222, %226 : vector<1x32xf32>
    %229 = arith.addf %227, %228 : vector<1x32xf32>
    %230 = math.tanh %229 : vector<1x32xf32>
    %231 = arith.mulf %224, %230 : vector<1x32xf32>
    %c1_83 = arith.constant 1 : index
    %c0_84 = arith.constant 0 : index
    %232 = vector.load %arg9[%c1_83, %c0_84] : memref<8x32xf32, #tpu.memory_space<vmem>>, vector<1x32xf32>
    tpu.vector_store %arg9[%c1_83, %c0_84], %231 {strides = array<i32>} : memref<8x32xf32, #tpu.memory_space<vmem>>, vector<1x32xf32>,
    %c2_85 = arith.constant 2 : index
    %c0_86 = arith.constant 0 : index
    %233 = vector.load %arg12[%c2_85, %c0_86] : memref<8x128xf32, #tpu.memory_space<vmem>>, vector<1x128xf32>
    %234 = arith.truncf %231 : vector<1x32xf32> to vector<1x32xbf16>
    %cst_87 = arith.constant dense<0.000000e+00> : vector<1x128xf32>
    %235 = tpu.matmul %234, %188, %cst_87 {dimension_numbers = #tpu.dot_dimension_numbers<[1], [0], [0], [1], [0, 0, 1, 1], [], []>} : vector<1x32xbf16>, vector<32x128xbf16>, vector<1x128xf32> -> vector<1x128xf32>
    %236 = arith.addf %233, %235 : vector<1x128xf32>
    %237 = vector.extract_strided_slice %236 {offsets = [0, 0], sizes = [1, 96], strides = [1, 1]} : vector<1x128xf32> to vector<1x96xf32>
    %238 = arith.negf %237 : vector<1x96xf32>
    %239 = math.exp %238 : vector<1x96xf32>
    %cst_88 = arith.constant 1.000000e+00 : f32
    %240 = vector.broadcast %cst_88 : f32 to vector<1x96xf32>
    %241 = arith.addf %240, %239 : vector<1x96xf32>
    %242 = arith.divf %240, %241 : vector<1x96xf32>
    %243 = vector.extract_strided_slice %242 {offsets = [0, 0], sizes = [1, 32], strides = [1, 1]} : vector<1x96xf32> to vector<1x32xf32>
    %244 = vector.extract_strided_slice %242 {offsets = [0, 32], sizes = [1, 32], strides = [1, 1]} : vector<1x96xf32> to vector<1x32xf32>
    %245 = vector.extract_strided_slice %242 {offsets = [0, 64], sizes = [1, 32], strides = [1, 1]} : vector<1x96xf32> to vector<1x32xf32>
    %246 = vector.extract_strided_slice %236 {offsets = [0, 96], sizes = [1, 32], strides = [1, 1]} : vector<1x128xf32> to vector<1x32xf32>
    %247 = math.tanh %246 : vector<1x32xf32>
    %248 = arith.mulf %244, %229 : vector<1x32xf32>
    %249 = arith.mulf %243, %247 : vector<1x32xf32>
    %250 = arith.addf %248, %249 : vector<1x32xf32>
    %251 = math.tanh %250 : vector<1x32xf32>
    %252 = arith.mulf %245, %251 : vector<1x32xf32>
    %c2_89 = arith.constant 2 : index
    %c0_90 = arith.constant 0 : index
    %253 = vector.load %arg9[%c2_89, %c0_90] : memref<8x32xf32, #tpu.memory_space<vmem>>, vector<1x32xf32>
    tpu.vector_store %arg9[%c2_89, %c0_90], %252 {strides = array<i32>} : memref<8x32xf32, #tpu.memory_space<vmem>>, vector<1x32xf32>,
    %c3_91 = arith.constant 3 : index
    %c0_92 = arith.constant 0 : index
    %254 = vector.load %arg12[%c3_91, %c0_92] : memref<8x128xf32, #tpu.memory_space<vmem>>, vector<1x128xf32>
    %255 = arith.truncf %252 : vector<1x32xf32> to vector<1x32xbf16>
    %cst_93 = arith.constant dense<0.000000e+00> : vector<1x128xf32>
    %256 = tpu.matmul %255, %188, %cst_93 {dimension_numbers = #tpu.dot_dimension_numbers<[1], [0], [0], [1], [0, 0, 1, 1], [], []>} : vector<1x32xbf16>, vector<32x128xbf16>, vector<1x128xf32> -> vector<1x128xf32>
    %257 = arith.addf %254, %256 : vector<1x128xf32>
    %258 = vector.extract_strided_slice %257 {offsets = [0, 0], sizes = [1, 96], strides = [1, 1]} : vector<1x128xf32> to vector<1x96xf32>
    %259 = arith.negf %258 : vector<1x96xf32>
    %260 = math.exp %259 : vector<1x96xf32>
    %cst_94 = arith.constant 1.000000e+00 : f32
    %261 = vector.broadcast %cst_94 : f32 to vector<1x96xf32>
    %262 = arith.addf %261, %260 : vector<1x96xf32>
    %263 = arith.divf %261, %262 : vector<1x96xf32>
    %264 = vector.extract_strided_slice %263 {offsets = [0, 0], sizes = [1, 32], strides = [1, 1]} : vector<1x96xf32> to vector<1x32xf32>
    %265 = vector.extract_strided_slice %263 {offsets = [0, 32], sizes = [1, 32], strides = [1, 1]} : vector<1x96xf32> to vector<1x32xf32>
    %266 = vector.extract_strided_slice %263 {offsets = [0, 64], sizes = [1, 32], strides = [1, 1]} : vector<1x96xf32> to vector<1x32xf32>
    %267 = vector.extract_strided_slice %257 {offsets = [0, 96], sizes = [1, 32], strides = [1, 1]} : vector<1x128xf32> to vector<1x32xf32>
    %268 = math.tanh %267 : vector<1x32xf32>
    %269 = arith.mulf %265, %250 : vector<1x32xf32>
    %270 = arith.mulf %264, %268 : vector<1x32xf32>
    %271 = arith.addf %269, %270 : vector<1x32xf32>
    %272 = math.tanh %271 : vector<1x32xf32>
    %273 = arith.mulf %266, %272 : vector<1x32xf32>
    %c3_95 = arith.constant 3 : index
    %c0_96 = arith.constant 0 : index
    %274 = vector.load %arg9[%c3_95, %c0_96] : memref<8x32xf32, #tpu.memory_space<vmem>>, vector<1x32xf32>
    tpu.vector_store %arg9[%c3_95, %c0_96], %273 {strides = array<i32>} : memref<8x32xf32, #tpu.memory_space<vmem>>, vector<1x32xf32>,
    %c4_97 = arith.constant 4 : index
    %c0_98 = arith.constant 0 : index
    %275 = vector.load %arg12[%c4_97, %c0_98] : memref<8x128xf32, #tpu.memory_space<vmem>>, vector<1x128xf32>
    %276 = arith.truncf %273 : vector<1x32xf32> to vector<1x32xbf16>
    %cst_99 = arith.constant dense<0.000000e+00> : vector<1x128xf32>
    %277 = tpu.matmul %276, %188, %cst_99 {dimension_numbers = #tpu.dot_dimension_numbers<[1], [0], [0], [1], [0, 0, 1, 1], [], []>} : vector<1x32xbf16>, vector<32x128xbf16>, vector<1x128xf32> -> vector<1x128xf32>
    %278 = arith.addf %275, %277 : vector<1x128xf32>
    %279 = vector.extract_strided_slice %278 {offsets = [0, 0], sizes = [1, 96], strides = [1, 1]} : vector<1x128xf32> to vector<1x96xf32>
    %280 = arith.negf %279 : vector<1x96xf32>
    %281 = math.exp %280 : vector<1x96xf32>
    %cst_100 = arith.constant 1.000000e+00 : f32
    %282 = vector.broadcast %cst_100 : f32 to vector<1x96xf32>
    %283 = arith.addf %282, %281 : vector<1x96xf32>
    %284 = arith.divf %282, %283 : vector<1x96xf32>
    %285 = vector.extract_strided_slice %284 {offsets = [0, 0], sizes = [1, 32], strides = [1, 1]} : vector<1x96xf32> to vector<1x32xf32>
    %286 = vector.extract_strided_slice %284 {offsets = [0, 32], sizes = [1, 32], strides = [1, 1]} : vector<1x96xf32> to vector<1x32xf32>
    %287 = vector.extract_strided_slice %284 {offsets = [0, 64], sizes = [1, 32], strides = [1, 1]} : vector<1x96xf32> to vector<1x32xf32>
    %288 = vector.extract_strided_slice %278 {offsets = [0, 96], sizes = [1, 32], strides = [1, 1]} : vector<1x128xf32> to vector<1x32xf32>
    %289 = math.tanh %288 : vector<1x32xf32>
    %290 = arith.mulf %286, %271 : vector<1x32xf32>
    %291 = arith.mulf %285, %289 : vector<1x32xf32>
    %292 = arith.addf %290, %291 : vector<1x32xf32>
    %293 = math.tanh %292 : vector<1x32xf32>
    %294 = arith.mulf %287, %293 : vector<1x32xf32>
    %c4_101 = arith.constant 4 : index
    %c0_102 = arith.constant 0 : index
    %295 = vector.load %arg9[%c4_101, %c0_102] : memref<8x32xf32, #tpu.memory_space<vmem>>, vector<1x32xf32>
    tpu.vector_store %arg9[%c4_101, %c0_102], %294 {strides = array<i32>} : memref<8x32xf32, #tpu.memory_space<vmem>>, vector<1x32xf32>,
    %c5_103 = arith.constant 5 : index
    %c0_104 = arith.constant 0 : index
    %296 = vector.load %arg12[%c5_103, %c0_104] : memref<8x128xf32, #tpu.memory_space<vmem>>, vector<1x128xf32>
    %297 = arith.truncf %294 : vector<1x32xf32> to vector<1x32xbf16>
    %cst_105 = arith.constant dense<0.000000e+00> : vector<1x128xf32>
    %298 = tpu.matmul %297, %188, %cst_105 {dimension_numbers = #tpu.dot_dimension_numbers<[1], [0], [0], [1], [0, 0, 1, 1], [], []>} : vector<1x32xbf16>, vector<32x128xbf16>, vector<1x128xf32> -> vector<1x128xf32>
    %299 = arith.addf %296, %298 : vector<1x128xf32>
    %300 = vector.extract_strided_slice %299 {offsets = [0, 0], sizes = [1, 96], strides = [1, 1]} : vector<1x128xf32> to vector<1x96xf32>
    %301 = arith.negf %300 : vector<1x96xf32>
    %302 = math.exp %301 : vector<1x96xf32>
    %cst_106 = arith.constant 1.000000e+00 : f32
    %303 = vector.broadcast %cst_106 : f32 to vector<1x96xf32>
    %304 = arith.addf %303, %302 : vector<1x96xf32>
    %305 = arith.divf %303, %304 : vector<1x96xf32>
    %306 = vector.extract_strided_slice %305 {offsets = [0, 0], sizes = [1, 32], strides = [1, 1]} : vector<1x96xf32> to vector<1x32xf32>
    %307 = vector.extract_strided_slice %305 {offsets = [0, 32], sizes = [1, 32], strides = [1, 1]} : vector<1x96xf32> to vector<1x32xf32>
    %308 = vector.extract_strided_slice %305 {offsets = [0, 64], sizes = [1, 32], strides = [1, 1]} : vector<1x96xf32> to vector<1x32xf32>
    %309 = vector.extract_strided_slice %299 {offsets = [0, 96], sizes = [1, 32], strides = [1, 1]} : vector<1x128xf32> to vector<1x32xf32>
    %310 = math.tanh %309 : vector<1x32xf32>
    %311 = arith.mulf %307, %292 : vector<1x32xf32>
    %312 = arith.mulf %306, %310 : vector<1x32xf32>
    %313 = arith.addf %311, %312 : vector<1x32xf32>
    %314 = math.tanh %313 : vector<1x32xf32>
    %315 = arith.mulf %308, %314 : vector<1x32xf32>
    %c5_107 = arith.constant 5 : index
    %c0_108 = arith.constant 0 : index
    %316 = vector.load %arg9[%c5_107, %c0_108] : memref<8x32xf32, #tpu.memory_space<vmem>>, vector<1x32xf32>
    tpu.vector_store %arg9[%c5_107, %c0_108], %315 {strides = array<i32>} : memref<8x32xf32, #tpu.memory_space<vmem>>, vector<1x32xf32>,
    %c6_109 = arith.constant 6 : index
    %c0_110 = arith.constant 0 : index
    %317 = vector.load %arg12[%c6_109, %c0_110] : memref<8x128xf32, #tpu.memory_space<vmem>>, vector<1x128xf32>
    %318 = arith.truncf %315 : vector<1x32xf32> to vector<1x32xbf16>
    %cst_111 = arith.constant dense<0.000000e+00> : vector<1x128xf32>
    %319 = tpu.matmul %318, %188, %cst_111 {dimension_numbers = #tpu.dot_dimension_numbers<[1], [0], [0], [1], [0, 0, 1, 1], [], []>} : vector<1x32xbf16>, vector<32x128xbf16>, vector<1x128xf32> -> vector<1x128xf32>
    %320 = arith.addf %317, %319 : vector<1x128xf32>
    %321 = vector.extract_strided_slice %320 {offsets = [0, 0], sizes = [1, 96], strides = [1, 1]} : vector<1x128xf32> to vector<1x96xf32>
    %322 = arith.negf %321 : vector<1x96xf32>
    %323 = math.exp %322 : vector<1x96xf32>
    %cst_112 = arith.constant 1.000000e+00 : f32
    %324 = vector.broadcast %cst_112 : f32 to vector<1x96xf32>
    %325 = arith.addf %324, %323 : vector<1x96xf32>
    %326 = arith.divf %324, %325 : vector<1x96xf32>
    %327 = vector.extract_strided_slice %326 {offsets = [0, 0], sizes = [1, 32], strides = [1, 1]} : vector<1x96xf32> to vector<1x32xf32>
    %328 = vector.extract_strided_slice %326 {offsets = [0, 32], sizes = [1, 32], strides = [1, 1]} : vector<1x96xf32> to vector<1x32xf32>
    %329 = vector.extract_strided_slice %326 {offsets = [0, 64], sizes = [1, 32], strides = [1, 1]} : vector<1x96xf32> to vector<1x32xf32>
    %330 = vector.extract_strided_slice %320 {offsets = [0, 96], sizes = [1, 32], strides = [1, 1]} : vector<1x128xf32> to vector<1x32xf32>
    %331 = math.tanh %330 : vector<1x32xf32>
    %332 = arith.mulf %328, %313 : vector<1x32xf32>
    %333 = arith.mulf %327, %331 : vector<1x32xf32>
    %334 = arith.addf %332, %333 : vector<1x32xf32>
    %335 = math.tanh %334 : vector<1x32xf32>
    %336 = arith.mulf %329, %335 : vector<1x32xf32>
    %c6_113 = arith.constant 6 : index
    %c0_114 = arith.constant 0 : index
    %337 = vector.load %arg9[%c6_113, %c0_114] : memref<8x32xf32, #tpu.memory_space<vmem>>, vector<1x32xf32>
    tpu.vector_store %arg9[%c6_113, %c0_114], %336 {strides = array<i32>} : memref<8x32xf32, #tpu.memory_space<vmem>>, vector<1x32xf32>,
    %c7_115 = arith.constant 7 : index
    %c0_116 = arith.constant 0 : index
    %338 = vector.load %arg12[%c7_115, %c0_116] : memref<8x128xf32, #tpu.memory_space<vmem>>, vector<1x128xf32>
    %339 = arith.truncf %336 : vector<1x32xf32> to vector<1x32xbf16>
    %cst_117 = arith.constant dense<0.000000e+00> : vector<1x128xf32>
    %340 = tpu.matmul %339, %188, %cst_117 {dimension_numbers = #tpu.dot_dimension_numbers<[1], [0], [0], [1], [0, 0, 1, 1], [], []>} : vector<1x32xbf16>, vector<32x128xbf16>, vector<1x128xf32> -> vector<1x128xf32>
    %341 = arith.addf %338, %340 : vector<1x128xf32>
    %342 = vector.extract_strided_slice %341 {offsets = [0, 0], sizes = [1, 96], strides = [1, 1]} : vector<1x128xf32> to vector<1x96xf32>
    %343 = arith.negf %342 : vector<1x96xf32>
    %344 = math.exp %343 : vector<1x96xf32>
    %cst_118 = arith.constant 1.000000e+00 : f32
    %345 = vector.broadcast %cst_118 : f32 to vector<1x96xf32>
    %346 = arith.addf %345, %344 : vector<1x96xf32>
    %347 = arith.divf %345, %346 : vector<1x96xf32>
    %348 = vector.extract_strided_slice %347 {offsets = [0, 0], sizes = [1, 32], strides = [1, 1]} : vector<1x96xf32> to vector<1x32xf32>
    %349 = vector.extract_strided_slice %347 {offsets = [0, 32], sizes = [1, 32], strides = [1, 1]} : vector<1x96xf32> to vector<1x32xf32>
    %350 = vector.extract_strided_slice %347 {offsets = [0, 64], sizes = [1, 32], strides = [1, 1]} : vector<1x96xf32> to vector<1x32xf32>
    %351 = vector.extract_strided_slice %341 {offsets = [0, 96], sizes = [1, 32], strides = [1, 1]} : vector<1x128xf32> to vector<1x32xf32>
    %352 = math.tanh %351 : vector<1x32xf32>
    %353 = arith.mulf %349, %334 : vector<1x32xf32>
    %354 = arith.mulf %348, %352 : vector<1x32xf32>
    %355 = arith.addf %353, %354 : vector<1x32xf32>
    %356 = math.tanh %355 : vector<1x32xf32>
    %357 = arith.mulf %350, %356 : vector<1x32xf32>
    %c7_119 = arith.constant 7 : index
    %c0_120 = arith.constant 0 : index
    %358 = vector.load %arg9[%c7_119, %c0_120] : memref<8x32xf32, #tpu.memory_space<vmem>>, vector<1x32xf32>
    tpu.vector_store %arg9[%c7_119, %c0_120], %357 {strides = array<i32>} : memref<8x32xf32, #tpu.memory_space<vmem>>, vector<1x32xf32>,
    %c1_121 = arith.constant 1 : index
    %c0_122 = arith.constant 0 : index
    %359 = vector.load %arg10[%c1_121, %c0_122] : memref<2x32xf32, #tpu.memory_space<vmem>>, vector<1x32xf32>
    tpu.vector_store %arg10[%c1_121, %c0_122], %357 {strides = array<i32>} : memref<2x32xf32, #tpu.memory_space<vmem>>, vector<1x32xf32>,
    %c1_123 = arith.constant 1 : index
    %c0_124 = arith.constant 0 : index
    %360 = vector.load %arg11[%c1_123, %c0_124] : memref<2x32xf32, #tpu.memory_space<vmem>>, vector<1x32xf32>
    tpu.vector_store %arg11[%c1_123, %c0_124], %355 {strides = array<i32>} : memref<2x32xf32, #tpu.memory_space<vmem>>, vector<1x32xf32>,
    return
  }
}

</mosaic_0001>

<llo_original>
// kernel: text_encoder_forward.1
$region0: #{text_encoder_forward.1}
  #allocation0 [shape = 'u32[]', space=smem, size = 0x4, offset = 0x4, fixed_abs, tag = 'smem constant byte address 0x4 - core index']
  #allocation1 [shape = 'u32[144,128]{1,0:T(1,128)}', space=vmem, size = 0x12000, scoped, tag = 'internal scratch']
  #allocation2 [shape = 'f32[8,128]{1,0:T(8,128)}', space=vmem, size = 0x1000, scoped, tag = 'scratch operand']
  %s0 = inlined_call_operand.vmem [shape: bf16[8,32], index: 0, kind: input, shape index: {}]
  %s1 = inlined_call_operand.vmem [shape: f32[2,32], index: 1, kind: input, shape index: {}]
  %s2 = inlined_call_operand.vmem [shape: f32[2,32], index: 2, kind: input, shape index: {}]
  %s3 = inlined_call_operand.vmem [shape: bf16[32,128], index: 3, kind: input, shape index: {}]
  %s4 = inlined_call_operand.vmem [shape: bf16[32,128], index: 4, kind: input, shape index: {}]
  %s5 = inlined_call_operand.vmem [shape: f32[1,128], index: 5, kind: input, shape index: {}]
  %s6 = inlined_call_operand.vmem [shape: bf16[32,128], index: 6, kind: input, shape index: {}]
  %s7 = inlined_call_operand.vmem [shape: bf16[32,128], index: 7, kind: input, shape index: {}]
  %s8 = inlined_call_operand.vmem [shape: f32[1,128], index: 8, kind: input, shape index: {}]
  %s9 = inlined_call_operand.hbm [shape: f32[8,32], index: 9, kind: output, shape index: {0}]
  %s10 = inlined_call_operand.hbm [shape: f32[2,32], index: 10, kind: output, shape index: {1}]
  %s11 = inlined_call_operand.hbm [shape: f32[2,32], index: 11, kind: output, shape index: {2}]
  %12 = xla_tuple %s9, %s10, %s11
  %s13 = sld [smem:[#allocation0]]
  $region62: #{text_encoder_forward.1} parent=0
    _
  %s15 = ssub.s32 1, %s13
  %s16 = scalar_select 0, %s15, %s13
  $region1: #{text_encoder_forward.1} parent=0
    #allocation3 [shape = 'u8[4096]{0}', space=vmem, size = 0x1000, scoped, tag = 'output window, operand 0, single buffered']
    #allocation4 [shape = 's32[1]{0}', space=sflag, size = 0x4, scoped, tag = 'scoped memory for text_encoder_forward.1']
    #allocation5 [shape = 'u8[1024]{0}', space=vmem, size = 0x400, scoped, tag = 'output window, operand 1, single buffered']
    #allocation6 [shape = 's32[1]{0}', space=sflag, size = 0x4, scoped, tag = 'scoped memory for text_encoder_forward.1']
    #allocation7 [shape = 'u8[1024]{0}', space=vmem, size = 0x400, scoped, tag = 'output window, operand 2, single buffered']
    %17 = vsyncpa [#allocation4], 0
    %18 = vsyncpa [#allocation6], 0
    // Predicated region
    $region2: #{text_encoder_forward.1} parent=1 // pred_check
      _
    $region3: #{text_encoder_forward.1} parent=1 // pred_check_branch
      %20 = sbr.rel (0) target = $region5
    $region4: #{text_encoder_forward.1} parent=1 // pred_region
      _
    $region5: #{text_encoder_forward.1} parent=1 // pred_fallthru
      _
    // Predicated region
    $region6: #{text_encoder_forward.1} parent=1 // pred_check
      _
    $region7: #{text_encoder_forward.1} parent=1 // pred_check_branch
      %22 = sbr.rel (0) target = $region9
    $region8: #{text_encoder_forward.1} parent=1 // pred_region
      _
    $region9: #{text_encoder_forward.1} parent=1 // pred_fallthru
      _
    // Predicated region
    $region10: #{text_encoder_forward.1} parent=1 // pred_check
      _
    $region11: #{text_encoder_forward.1} parent=1 // pred_check_branch
      %24 = sbr.rel (0) target = $region13
    $region12: #{text_encoder_forward.1} parent=1 // pred_region
      _
    $region13: #{text_encoder_forward.1} parent=1 // pred_fallthru
      _
    // Predicated region
    $region14: #{text_encoder_forward.1} parent=1 // pred_check
      _
    $region15: #{text_encoder_forward.1} parent=1 // pred_check_branch
      %26 = sbr.rel (0) target = $region17
    $region16: #{text_encoder_forward.1} parent=1 // pred_region
      _
    $region17: #{text_encoder_forward.1} parent=1 // pred_fallthru
      _
    // Predicated region
    $region18: #{text_encoder_forward.1} parent=1 // pred_check
      _
    $region19: #{text_encoder_forward.1} parent=1 // pred_check_branch
      %28 = sbr.rel (0) target = $region21
    $region20: #{text_encoder_forward.1} parent=1 // pred_region
      _
    $region21: #{text_encoder_forward.1} parent=1 // pred_fallthru
      _
    // Predicated region
    $region22: #{text_encoder_forward.1} parent=1 // pred_check
      _
    $region23: #{text_encoder_forward.1} parent=1 // pred_check_branch
      %30 = sbr.rel (0) target = $region25
    $region24: #{text_encoder_forward.1} parent=1 // pred_region
      _
    $region25: #{text_encoder_forward.1} parent=1 // pred_fallthru
      _
    // Predicated region
    $region26: #{text_encoder_forward.1} parent=1 // pred_check
      _
    $region27: #{text_encoder_forward.1} parent=1 // pred_check_branch
      %32 = sbr.rel (0) target = $region29
    $region28: #{text_encoder_forward.1} parent=1 // pred_region
      _
    $region29: #{text_encoder_forward.1} parent=1 // pred_fallthru
      _
    // Predicated region
    $region30: #{text_encoder_forward.1} parent=1 // pred_check
      _
    $region31: #{text_encoder_forward.1} parent=1 // pred_check_branch
      %34 = sbr.rel (0) target = $region33
    $region32: #{text_encoder_forward.1} parent=1 // pred_region
      _
    $region33: #{text_encoder_forward.1} parent=1 // pred_fallthru
      _
    // Predicated region
    $region34: #{text_encoder_forward.1} parent=1 // pred_check
      _
    $region35: #{text_encoder_forward.1} parent=1 // pred_check_branch
      %36 = sbr.rel (0) target = $region37
    $region36: #{text_encoder_forward.1} parent=1 // pred_region
      _
    $region37: #{text_encoder_forward.1} parent=1 // pred_fallthru
      _
    %v38 = vld [vmem:[%s0] sm:$0xf]
    %v39 = vld [vmem:[%s3] sm:$0xf]
    %v40 = vld [vmem:[%s3 + $0x4] sm:$0xf]
    %v41 = vld [vmem:[%s3 + $0x8] sm:$0xf]
    %v42 = vld [vmem:[%s3 + $0xc] sm:$0xf]
    %v43 = vld [vmem:[%s5] sm:$0x1]
    %v45 = vlaneseq
    %v46 = vshrl.u32 %v45, 7
    %v47 = vsub.s32 0, %v46
    %v48 = vrot.slane %v43, %v47
    %v54 = vunpack.c.l.b16 %v39
    %v55 = vunpack.c.l.b16 %v40
    %v56 = vunpack.c.l.b16 %v41
    %v57 = vunpack.c.l.b16 %v42
    %v58 = vpack.c.b16 %v55, %v54
    %v59 = vpack.c.b16 %v57, %v56
    %vm62 = vcmask 261120
    %v64 = vsel %vm62, %v38, 0
    %66 = vmatprep.subr.bf16.mxu0 0
    %67 = vmatpush1.bf16.msra.mxu0 %v58
    %68 = vmatprep.subr.bf16.mxu0 0
    %69 = vmatpush1.bf16.msra.mxu0 %v59
    %70 = vmatprep.subr.bf16.mxu0 0
    %71 = vmatpush1.bf16.msra.mxu0 0
    %72 = vmatprep.subr.bf16.mxu0 0
    %73 = vmatpush1.bf16.msra.mxu0 0
    %74 = vmatprep.subr.bf16.mxu0 0
    %75 = vmatpush1.bf16.msra.mxu0 0
    %76 = vmatprep.subr.bf16.mxu0 0
    %77 = vmatpush1.bf16.msra.mxu0 0
    %78 = vmatprep.subr.bf16.mxu0 0
    %79 = vmatpush1.bf16.msra.mxu0 0
    %80 = vmatprep.subr.bf16.mxu0 0
    %81 = vmatpush1.bf16.msra.mxu0 0
    %82 = vmatprep.subr.bf16.mxu0 0
    %83 = vmatpush1.bf16.msra.mxu0 0
    %84 = vmatprep.subr.bf16.mxu0 0
    %85 = vmatpush1.bf16.msra.mxu0 0
    %86 = vmatprep.subr.bf16.mxu0 0
    %87 = vmatpush1.bf16.msra.mxu0 0
    %88 = vmatprep.subr.bf16.mxu0 0
    %89 = vmatpush1.bf16.msra.mxu0 0
    %90 = vmatprep.subr.bf16.mxu0 0
    %91 = vmatpush1.bf16.msra.mxu0 0
    %92 = vmatprep.subr.bf16.mxu0 0
    %93 = vmatpush1.bf16.msra.mxu0 0
    %94 = vmatprep.subr.bf16.mxu0 0
    %95 = vmatpush1.bf16.msra.mxu0 0
    %96 = vmatprep.subr.bf16.mxu0 0
    %97 = vmatpush1.bf16.msra.mxu0 0
    %98 = vmatprep.mubr.bf16.mxu0 0
    %99 = vmatmul.mubr.bf16.gmra.mrb[0].mxu0 %v64
    %v100 = vpop.f32.mrb[0].mxu0
    %v101 = vadd.f32 %v48, %v100
    %v102 = vpop.f32.mrb[0].mxu0
    %v103 = vpop.f32.mrb[0].mxu0
    %v104 = vpop.f32.mrb[0].mxu0
    %105 = vdwg.mxu0
    %106 = vst [vmem:[#allocation2] sm:$0xff] %v101
    %v107 = vld [vmem:[%s4] sm:$0xf]
    %v108 = vld [vmem:[%s4 + $0x4] sm:$0xf]
    %v109 = vld [vmem:[%s4 + $0x8] sm:$0xf]
    %v110 = vld [vmem:[%s4 + $0xc] sm:$0xf]
    %v111 = vld [vmem:[%s1] sm:$0x1]
    %v112 = vld [vmem:[%s2] sm:$0x1]
    %v113 = vld [vmem:[#allocation2] sm:$0x1]
    %v114 = vpack.c.bf16 %v111, %v111
    %v119 = vunpack.c.l.b16 %v107
    %v120 = vunpack.c.l.b16 %v108
    %v121 = vunpack.c.l.b16 %v109
    %v122 = vunpack.c.l.b16 %v110
    %v123 = vpack.c.b16 %v120, %v119
    %v124 = vpack.c.b16 %v122, %v121
    %v128 = vsel %vm62, %v114, 0
    %130 = vmatprep.subr.bf16.mxu0 0
    %131 = vmatpush1.bf16.msra.mxu0 %v123
    %132 = vmatprep.subr.bf16.mxu0 0
    %133 = vmatpush1.bf16.msra.mxu0 %v124
    %134 = vmatprep.subr.bf16.mxu0 0
    %135 = vmatpush1.bf16.msra.mxu0 0
    %136 = vmatprep.subr.bf16.mxu0 0
    %137 = vmatpush1.bf16.msra.mxu0 0
    %138 = vmatprep.subr.bf16.mxu0 0
    %139 = vmatpush1.bf16.msra.mxu0 0
    %140 = vmatprep.subr.bf16.mxu0 0
    %141 = vmatpush1.bf16.msra.mxu0 0
    %142 = vmatprep.subr.bf16.mxu0 0
    %143 = vmatpush1.bf16.msra.mxu0 0
    %144 = vmatprep.subr.bf16.mxu0 0
    %145 = vmatpush1.bf16.msra.mxu0 0
    %146 = vmatprep.subr.bf16.mxu0 0
    %147 = vmatpush1.bf16.msra.mxu0 0
    %148 = vmatprep.subr.bf16.mxu0 0
    %149 = vmatpush1.bf16.msra.mxu0 0
    %150 = vmatprep.subr.bf16.mxu0 0
    %151 = vmatpush1.bf16.msra.mxu0 0
    %152 = vmatprep.subr.bf16.mxu0 0
    %153 = vmatpush1.bf16.msra.mxu0 0
    %154 = vmatprep.subr.bf16.mxu0 0
    %155 = vmatpush1.bf16.msra.mxu0 0
    %156 = vmatprep.subr.bf16.mxu0 0
    %157 = vmatpush1.bf16.msra.mxu0 0
    %158 = vmatprep.subr.bf16.mxu0 0
    %159 = vmatpush1.bf16.msra.mxu0 0
    %160 = vmatprep.subr.bf16.mxu0 0
    %161 = vmatpush1.bf16.msra.mxu0 0
    %162 = vmatprep.mubr.bf16.mxu0 0
    %163 = vmatmul.mubr.bf16.gmra.mrb[0].mxu0 %v128
    %v164 = vpop.f32.mrb[0].mxu0
    %v165 = vadd.f32 0.0, %v164
    %v166 = vpop.f32.mrb[0].mxu0
    %v167 = vpop.f32.mrb[0].mxu0
    %v168 = vpop.f32.mrb[0].mxu0
    %169 = vdwg.mxu0
    %v170 = vadd.f32 %v113, %v165
    %v171 = vxor.u32 %v170, 2147483648
    %v172 = vmul.f32 %v171, 1.442695
    %v173 = vpow.pop %v172
    %v174 = vadd.f32 %v173, 1.0
    %v175 = vrcp.pop %v174
    %v176 = vmul.f32 1.0, %v175
    %v177 = vtanh.pop %v170
    %179 = vrot.lane.b32.xlu0 %v112, 32
    %v180 = vpop.permute.xlu0 %179
    %v182 = vmul.f32 %v176, %v180
    %184 = vrot.lane.b32.xlu0 %v177, 32
    %v185 = vpop.permute.xlu0 %184
    %v187 = vmul.f32 %v176, %v185
    %189 = vrot.lane.b32.xlu0 %v187, 32
    %v190 = vpop.permute.xlu0 %189
    %v192 = vadd.f32 %v182, %v190
    %v193 = vtanh.pop %v192
    %195 = vrot.lane.b32.xlu0 %v193, 32
    %v196 = vpop.permute.xlu0 %195
    %v198 = vmul.f32 %v176, %v196
    %200 = vrot.lane.b32.xlu0 %v198, 64
    %v201 = vpop.permute.xlu0 %200
    %vm203 = vcmask 253952
    %204 = vst.msk [vmem:[#allocation3] sm:$0x1] %vm203, %v201
    %v205 = vld [vmem:[#allocation2 + $0x1] sm:$0x1]
    %v206 = vpack.c.bf16 %v198, %v198
    %208 = vrot.lane.b32.xlu0 %v206, 64
    %v209 = vpop.permute.xlu0 %208
    %v211 = vsel %vm62, %v209, 0
    %213 = vmatprep.subr.bf16.mxu0 0
    %214 = vmatpush1.bf16.msra.mxu0 %v123
    %215 = vmatprep.subr.bf16.mxu0 0
    %216 = vmatpush1.bf16.msra.mxu0 %v124
    %217 = vmatprep.subr.bf16.mxu0 0
    %218 = vmatpush1.bf16.msra.mxu0 0
    %219 = vmatprep.subr.bf16.mxu0 0
    %220 = vmatpush1.bf16.msra.mxu0 0
    %221 = vmatprep.subr.bf16.mxu0 0
    %222 = vmatpush1.bf16.msra.mxu0 0
    %223 = vmatprep.subr.bf16.mxu0 0
    %224 = vmatpush1.bf16.msra.mxu0 0
    %225 = vmatprep.subr.bf16.mxu0 0
    %226 = vmatpush1.bf16.msra.mxu0 0
    %227 = vmatprep.subr.bf16.mxu0 0
    %228 = vmatpush1.bf16.msra.mxu0 0
    %229 = vmatprep.subr.bf16.mxu0 0
    %230 = vmatpush1.bf16.msra.mxu0 0
    %231 = vmatprep.subr.bf16.mxu0 0
    %232 = vmatpush1.bf16.msra.mxu0 0
    %233 = vmatprep.subr.bf16.mxu0 0
    %234 = vmatpush1.bf16.msra.mxu0 0
    %235 = vmatprep.subr.bf16.mxu0 0
    %236 = vmatpush1.bf16.msra.mxu0 0
    %237 = vmatprep.subr.bf16.mxu0 0
    %238 = vmatpush1.bf16.msra.mxu0 0
    %239 = vmatprep.subr.bf16.mxu0 0
    %240 = vmatpush1.bf16.msra.mxu0 0
    %241 = vmatprep.subr.bf16.mxu0 0
    %242 = vmatpush1.bf16.msra.mxu0 0
    %243 = vmatprep.subr.bf16.mxu0 0
    %244 = vmatpush1.bf16.msra.mxu0 0
    %245 = vmatprep.mubr.bf16.mxu0 0
    %246 = vmatmul.mubr.bf16.gmra.mrb[0].mxu0 %v211
    %v247 = vpop.f32.mrb[0].mxu0
    %v248 = vadd.f32 0.0, %v247
    %v249 = vpop.f32.mrb[0].mxu0
    %v250 = vpop.f32.mrb[0].mxu0
    %v251 = vpop.f32.mrb[0].mxu0
    %252 = vdwg.mxu0
    %v253 = vadd.f32 %v205, %v248
    %v254 = vxor.u32 %v253, 2147483648
    %v255 = vmul.f32 %v254, 1.442695
    %v256 = vpow.pop %v255
    %v257 = vadd.f32 %v256, 1.0
    %v258 = vrcp.pop %v257
    %v259 = vmul.f32 1.0, %v258
    %v260 = vtanh.pop %v253
    %v261 = vmul.f32 %v259, %v192
    %263 = vrot.lane.b32.xlu0 %v260, 32
    %v264 = vpop.permute.xlu0 %263
    %v266 = vmul.f32 %v259, %v264
    %268 = vrot.lane.b32.xlu0 %v266, 32
    %v269 = vpop.permute.xlu0 %268
    %v271 = vadd.f32 %v261, %v269
    %v272 = vtanh.pop %v271
    %274 = vrot.lane.b32.xlu0 %v272, 32
    %v275 = vpop.permute.xlu0 %274
    %v277 = vmul.f32 %v259, %v275
    %279 = vrot.lane.b32.xlu0 %v277, 64
    %v280 = vpop.permute.xlu0 %279
    %282 = vst.msk [vmem:[#allocation3 + $0x1] sm:$0x1] %vm203, %v280
    %v283 = vld [vmem:[#allocation2 + $0x2] sm:$0x1]
    %v284 = vpack.c.bf16 %v277, %v277
    %286 = vrot.lane.b32.xlu0 %v284, 64
    %v287 = vpop.permute.xlu0 %286
    %v289 = vsel %vm62, %v287, 0
    %291 = vmatprep.subr.bf16.mxu0 0
    %292 = vmatpush1.bf16.msra.mxu0 %v123
    %293 = vmatprep.subr.bf16.mxu0 0
    %294 = vmatpush1.bf16.msra.mxu0 %v124
    %295 = vmatprep.subr.bf16.mxu0 0
    %296 = vmatpush1.bf16.msra.mxu0 0
    %297 = vmatprep.subr.bf16.mxu0 0
    %298 = vmatpush1.bf16.msra.mxu0 0
    %299 = vmatprep.subr.bf16.mxu0 0
    %300 = vmatpush1.bf16.msra.mxu0 0
    %301 = vmatprep.subr.bf16.mxu0 0
    %302 = vmatpush1.bf16.msra.mxu0 0
    %303 = vmatprep.subr.bf16.mxu0 0
    %304 = vmatpush1.bf16.msra.mxu0 0
    %305 = vmatprep.subr.bf16.mxu0 0
    %306 = vmatpush1.bf16.msra.mxu0 0
    %307 = vmatprep.subr.bf16.mxu0 0
    %308 = vmatpush1.bf16.msra.mxu0 0
    %309 = vmatprep.subr.bf16.mxu0 0
    %310 = vmatpush1.bf16.msra.mxu0 0
    %311 = vmatprep.subr.bf16.mxu0 0
    %312 = vmatpush1.bf16.msra.mxu0 0
    %313 = vmatprep.subr.bf16.mxu0 0
    %314 = vmatpush1.bf16.msra.mxu0 0
    %315 = vmatprep.subr.bf16.mxu0 0
    %316 = vmatpush1.bf16.msra.mxu0 0
    %317 = vmatprep.subr.bf16.mxu0 0
    %318 = vmatpush1.bf16.msra.mxu0 0
    %319 = vmatprep.subr.bf16.mxu0 0
    %320 = vmatpush1.bf16.msra.mxu0 0
    %321 = vmatprep.subr.bf16.mxu0 0
    %322 = vmatpush1.bf16.msra.mxu0 0
    %323 = vmatprep.mubr.bf16.mxu0 0
    %324 = vmatmul.mubr.bf16.gmra.mrb[0].mxu0 %v289
    %v325 = vpop.f32.mrb[0].mxu0
    %v326 = vadd.f32 0.0, %v325
    %v327 = vpop.f32.mrb[0].mxu0
    %v328 = vpop.f32.mrb[0].mxu0
    %v329 = vpop.f32.mrb[0].mxu0
    %330 = vdwg.mxu0
    %v331 = vadd.f32 %v283, %v326
    %v332 = vxor.u32 %v331, 2147483648
    %v333 = vmul.f32 %v332, 1.442695
    %v334 = vpow.pop %v333
    %v335 = vadd.f32 %v334, 1.0
    %v336 = vrcp.pop %v335
    %v337 = vmul.f32 1.0, %v336
    %v338 = vtanh.pop %v331
    %v339 = vmul.f32 %v337, %v271
    %341 = vrot.lane.b32.xlu0 %v338, 32
    %v342 = vpop.permute.xlu0 %341
    %v344 = vmul.f32 %v337, %v342
    %346 = vrot.lane.b32.xlu0 %v344, 32
    %v347 = vpop.permute.xlu0 %346
    %v349 = vadd.f32 %v339, %v347
    %v350 = vtanh.pop %v349
    %352 = vrot.lane.b32.xlu0 %v350, 32
    %v353 = vpop.permute.xlu0 %352
    %v355 = vmul.f32 %v337, %v353
    %357 = vrot.lane.b32.xlu0 %v355, 64
    %v358 = vpop.permute.xlu0 %357
    %360 = vst.msk [vmem:[#allocation3 + $0x2] sm:$0x1] %vm203, %v358
    %v361 = vld [vmem:[#allocation2 + $0x3] sm:$0x1]
    %v362 = vpack.c.bf16 %v355, %v355
    %364 = vrot.lane.b32.xlu0 %v362, 64
    %v365 = vpop.permute.xlu0 %364
    %v367 = vsel %vm62, %v365, 0
    %369 = vmatprep.subr.bf16.mxu0 0
    %370 = vmatpush1.bf16.msra.mxu0 %v123
    %371 = vmatprep.subr.bf16.mxu0 0
    %372 = vmatpush1.bf16.msra.mxu0 %v124
    %373 = vmatprep.subr.bf16.mxu0 0
    %374 = vmatpush1.bf16.msra.mxu0 0
    %375 = vmatprep.subr.bf16.mxu0 0
    %376 = vmatpush1.bf16.msra.mxu0 0
    %377 = vmatprep.subr.bf16.mxu0 0
    %378 = vmatpush1.bf16.msra.mxu0 0
    %379 = vmatprep.subr.bf16.mxu0 0
    %380 = vmatpush1.bf16.msra.mxu0 0
    %381 = vmatprep.subr.bf16.mxu0 0
    %382 = vmatpush1.bf16.msra.mxu0 0
    %383 = vmatprep.subr.bf16.mxu0 0
    %384 = vmatpush1.bf16.msra.mxu0 0
    %385 = vmatprep.subr.bf16.mxu0 0
    %386 = vmatpush1.bf16.msra.mxu0 0
    %387 = vmatprep.subr.bf16.mxu0 0
    %388 = vmatpush1.bf16.msra.mxu0 0
    %389 = vmatprep.subr.bf16.mxu0 0
    %390 = vmatpush1.bf16.msra.mxu0 0
    %391 = vmatprep.subr.bf16.mxu0 0
    %392 = vmatpush1.bf16.msra.mxu0 0
    %393 = vmatprep.subr.bf16.mxu0 0
    %394 = vmatpush1.bf16.msra.mxu0 0
    %395 = vmatprep.subr.bf16.mxu0 0
    %396 = vmatpush1.bf16.msra.mxu0 0
    %397 = vmatprep.subr.bf16.mxu0 0
    %398 = vmatpush1.bf16.msra.mxu0 0
    %399 = vmatprep.subr.bf16.mxu0 0
    %400 = vmatpush1.bf16.msra.mxu0 0
    %401 = vmatprep.mubr.bf16.mxu0 0
    %402 = vmatmul.mubr.bf16.gmra.mrb[0].mxu0 %v367
    %v403 = vpop.f32.mrb[0].mxu0
    %v404 = vadd.f32 0.0, %v403
    %v405 = vpop.f32.mrb[0].mxu0
    %v406 = vpop.f32.mrb[0].mxu0
    %v407 = vpop.f32.mrb[0].mxu0
    %408 = vdwg.mxu0
    %v409 = vadd.f32 %v361, %v404
    %v410 = vxor.u32 %v409, 2147483648
    %v411 = vmul.f32 %v410, 1.442695
    %v412 = vpow.pop %v411
    %v413 = vadd.f32 %v412, 1.0
    %v414 = vrcp.pop %v413
    %v415 = vmul.f32 1.0, %v414
    %v416 = vtanh.pop %v409
    %v417 = vmul.f32 %v415, %v349
    %419 = vrot.lane.b32.xlu0 %v416, 32
    %v420 = vpop.permute.xlu0 %419
    %v422 = vmul.f32 %v415, %v420
    %424 = vrot.lane.b32.xlu0 %v422, 32
    %v425 = vpop.permute.xlu0 %424
    %v427 = vadd.f32 %v417, %v425
    %v428 = vtanh.pop %v427
    %430 = vrot.lane.b32.xlu0 %v428, 32
    %v431 = vpop.permute.xlu0 %430
    %v433 = vmul.f32 %v415, %v431
    %435 = vrot.lane.b32.xlu0 %v433, 64
    %v436 = vpop.permute.xlu0 %435
    %438 = vst.msk [vmem:[#allocation3 + $0x3] sm:$0x1] %vm203, %v436
    %v439 = vld [vmem:[#allocation2 + $0x4] sm:$0x1]
    %v440 = vpack.c.bf16 %v433, %v433
    %442 = vrot.lane.b32.xlu0 %v440, 64
    %v443 = vpop.permute.xlu0 %442
    %v445 = vsel %vm62, %v443, 0
    %447 = vmatprep.subr.bf16.mxu0 0
    %448 = vmatpush1.bf16.msra.mxu0 %v123
    %449 = vmatprep.subr.bf16.mxu0 0
    %450 = vmatpush1.bf16.msra.mxu0 %v124
    %451 = vmatprep.subr.bf16.mxu0 0
    %452 = vmatpush1.bf16.msra.mxu0 0
    %453 = vmatprep.subr.bf16.mxu0 0
    %454 = vmatpush1.bf16.msra.mxu0 0
    %455 = vmatprep.subr.bf16.mxu0 0
    %456 = vmatpush1.bf16.msra.mxu0 0
    %457 = vmatprep.subr.bf16.mxu0 0
    %458 = vmatpush1.bf16.msra.mxu0 0
    %459 = vmatprep.subr.bf16.mxu0 0
    %460 = vmatpush1.bf16.msra.mxu0 0
    %461 = vmatprep.subr.bf16.mxu0 0
    %462 = vmatpush1.bf16.msra.mxu0 0
    %463 = vmatprep.subr.bf16.mxu0 0
    %464 = vmatpush1.bf16.msra.mxu0 0
    %465 = vmatprep.subr.bf16.mxu0 0
    %466 = vmatpush1.bf16.msra.mxu0 0
    %467 = vmatprep.subr.bf16.mxu0 0
    %468 = vmatpush1.bf16.msra.mxu0 0
    %469 = vmatprep.subr.bf16.mxu0 0
    %470 = vmatpush1.bf16.msra.mxu0 0
    %471 = vmatprep.subr.bf16.mxu0 0
    %472 = vmatpush1.bf16.msra.mxu0 0
    %473 = vmatprep.subr.bf16.mxu0 0
    %474 = vmatpush1.bf16.msra.mxu0 0
    %475 = vmatprep.subr.bf16.mxu0 0
    %476 = vmatpush1.bf16.msra.mxu0 0
    %477 = vmatprep.subr.bf16.mxu0 0
    %478 = vmatpush1.bf16.msra.mxu0 0
    %479 = vmatprep.mubr.bf16.mxu0 0
    %480 = vmatmul.mubr.bf16.gmra.mrb[0].mxu0 %v445
    %v481 = vpop.f32.mrb[0].mxu0
    %v482 = vadd.f32 0.0, %v481
    %v483 = vpop.f32.mrb[0].mxu0
    %v484 = vpop.f32.mrb[0].mxu0
    %v485 = vpop.f32.mrb[0].mxu0
    %486 = vdwg.mxu0
    %v487 = vadd.f32 %v439, %v482
    %v488 = vxor.u32 %v487, 2147483648
    %v489 = vmul.f32 %v488, 1.442695
    %v490 = vpow.pop %v489
    %v491 = vadd.f32 %v490, 1.0
    %v492 = vrcp.pop %v491
    %v493 = vmul.f32 1.0, %v492
    %v494 = vtanh.pop %v487
    %v495 = vmul.f32 %v493, %v427
    %497 = vrot.lane.b32.xlu0 %v494, 32
    %v498 = vpop.permute.xlu0 %497
    %v500 = vmul.f32 %v493, %v498
    %502 = vrot.lane.b32.xlu0 %v500, 32
    %v503 = vpop.permute.xlu0 %502
    %v505 = vadd.f32 %v495, %v503
    %v506 = vtanh.pop %v505
    %508 = vrot.lane.b32.xlu0 %v506, 32
    %v509 = vpop.permute.xlu0 %508
    %v511 = vmul.f32 %v493, %v509
    %513 = vrot.lane.b32.xlu0 %v511, 64
    %v514 = vpop.permute.xlu0 %513
    %516 = vst.msk [vmem:[#allocation3 + $0x4] sm:$0x1] %vm203, %v514
    %v517 = vld [vmem:[#allocation2 + $0x5] sm:$0x1]
    %v518 = vpack.c.bf16 %v511, %v511
    %520 = vrot.lane.b32.xlu0 %v518, 64
    %v521 = vpop.permute.xlu0 %520
    %v523 = vsel %vm62, %v521, 0
    %525 = vmatprep.subr.bf16.mxu0 0
    %526 = vmatpush1.bf16.msra.mxu0 %v123
    %527 = vmatprep.subr.bf16.mxu0 0
    %528 = vmatpush1.bf16.msra.mxu0 %v124
    %529 = vmatprep.subr.bf16.mxu0 0
    %530 = vmatpush1.bf16.msra.mxu0 0
    %531 = vmatprep.subr.bf16.mxu0 0
    %532 = vmatpush1.bf16.msra.mxu0 0
    %533 = vmatprep.subr.bf16.mxu0 0
    %534 = vmatpush1.bf16.msra.mxu0 0
    %535 = vmatprep.subr.bf16.mxu0 0
    %536 = vmatpush1.bf16.msra.mxu0 0
    %537 = vmatprep.subr.bf16.mxu0 0
    %538 = vmatpush1.bf16.msra.mxu0 0
    %539 = vmatprep.subr.bf16.mxu0 0
    %540 = vmatpush1.bf16.msra.mxu0 0
    %541 = vmatprep.subr.bf16.mxu0 0
    %542 = vmatpush1.bf16.msra.mxu0 0
    %543 = vmatprep.subr.bf16.mxu0 0
    %544 = vmatpush1.bf16.msra.mxu0 0
    %545 = vmatprep.subr.bf16.mxu0 0
    %546 = vmatpush1.bf16.msra.mxu0 0
    %547 = vmatprep.subr.bf16.mxu0 0
    %548 = vmatpush1.bf16.msra.mxu0 0
    %549 = vmatprep.subr.bf16.mxu0 0
    %550 = vmatpush1.bf16.msra.mxu0 0
    %551 = vmatprep.subr.bf16.mxu0 0
    %552 = vmatpush1.bf16.msra.mxu0 0
    %553 = vmatprep.subr.bf16.mxu0 0
    %554 = vmatpush1.bf16.msra.mxu0 0
    %555 = vmatprep.subr.bf16.mxu0 0
    %556 = vmatpush1.bf16.msra.mxu0 0
    %557 = vmatprep.mubr.bf16.mxu0 0
    %558 = vmatmul.mubr.bf16.gmra.mrb[0].mxu0 %v523
    %v559 = vpop.f32.mrb[0].mxu0
    %v560 = vadd.f32 0.0, %v559
    %v561 = vpop.f32.mrb[0].mxu0
    %v562 = vpop.f32.mrb[0].mxu0
    %v563 = vpop.f32.mrb[0].mxu0
    %564 = vdwg.mxu0
    %v565 = vadd.f32 %v517, %v560
    %v566 = vxor.u32 %v565, 2147483648
    %v567 = vmul.f32 %v566, 1.442695
    %v568 = vpow.pop %v567
    %v569 = vadd.f32 %v568, 1.0
    %v570 = vrcp.pop %v569
    %v571 = vmul.f32 1.0, %v570
    %v572 = vtanh.pop %v565
    %v573 = vmul.f32 %v571, %v505
    %575 = vrot.lane.b32.xlu0 %v572, 32
    %v576 = vpop.permute.xlu0 %575
    %v578 = vmul.f32 %v571, %v576
    %580 = vrot.lane.b32.xlu0 %v578, 32
    %v581 = vpop.permute.xlu0 %580
    %v583 = vadd.f32 %v573, %v581
    %v584 = vtanh.pop %v583
    %586 = vrot.lane.b32.xlu0 %v584, 32
    %v587 = vpop.permute.xlu0 %586
    %v589 = vmul.f32 %v571, %v587
    %591 = vrot.lane.b32.xlu0 %v589, 64
    %v592 = vpop.permute.xlu0 %591
    %594 = vst.msk [vmem:[#allocation3 + $0x5] sm:$0x1] %vm203, %v592
    %v595 = vld [vmem:[#allocation2 + $0x6] sm:$0x1]
    %v596 = vpack.c.bf16 %v589, %v589
    %598 = vrot.lane.b32.xlu0 %v596, 64
    %v599 = vpop.permute.xlu0 %598
    %v601 = vsel %vm62, %v599, 0
    %603 = vmatprep.subr.bf16.mxu0 0
    %604 = vmatpush1.bf16.msra.mxu0 %v123
    %605 = vmatprep.subr.bf16.mxu0 0
    %606 = vmatpush1.bf16.msra.mxu0 %v124
    %607 = vmatprep.subr.bf16.mxu0 0
    %608 = vmatpush1.bf16.msra.mxu0 0
    %609 = vmatprep.subr.bf16.mxu0 0
    %610 = vmatpush1.bf16.msra.mxu0 0
    %611 = vmatprep.subr.bf16.mxu0 0
    %612 = vmatpush1.bf16.msra.mxu0 0
    %613 = vmatprep.subr.bf16.mxu0 0
    %614 = vmatpush1.bf16.msra.mxu0 0
    %615 = vmatprep.subr.bf16.mxu0 0
    %616 = vmatpush1.bf16.msra.mxu0 0
    %617 = vmatprep.subr.bf16.mxu0 0
    %618 = vmatpush1.bf16.msra.mxu0 0
    %619 = vmatprep.subr.bf16.mxu0 0
    %620 = vmatpush1.bf16.msra.mxu0 0
    %621 = vmatprep.subr.bf16.mxu0 0
    %622 = vmatpush1.bf16.msra.mxu0 0
    %623 = vmatprep.subr.bf16.mxu0 0
    %624 = vmatpush1.bf16.msra.mxu0 0
    %625 = vmatprep.subr.bf16.mxu0 0
    %626 = vmatpush1.bf16.msra.mxu0 0
    %627 = vmatprep.subr.bf16.mxu0 0
    %628 = vmatpush1.bf16.msra.mxu0 0
    %629 = vmatprep.subr.bf16.mxu0 0
    %630 = vmatpush1.bf16.msra.mxu0 0
    %631 = vmatprep.subr.bf16.mxu0 0
    %632 = vmatpush1.bf16.msra.mxu0 0
    %633 = vmatprep.subr.bf16.mxu0 0
    %634 = vmatpush1.bf16.msra.mxu0 0
    %635 = vmatprep.mubr.bf16.mxu0 0
    %636 = vmatmul.mubr.bf16.gmra.mrb[0].mxu0 %v601
    %v637 = vpop.f32.mrb[0].mxu0
    %v638 = vadd.f32 0.0, %v637
    %v639 = vpop.f32.mrb[0].mxu0
    %v640 = vpop.f32.mrb[0].mxu0
    %v641 = vpop.f32.mrb[0].mxu0
    %642 = vdwg.mxu0
    %v643 = vadd.f32 %v595, %v638
    %v644 = vxor.u32 %v643, 2147483648
    %v645 = vmul.f32 %v644, 1.442695
    %v646 = vpow.pop %v645
    %v647 = vadd.f32 %v646, 1.0
    %v648 = vrcp.pop %v647
    %v649 = vmul.f32 1.0, %v648
    %v650 = vtanh.pop %v643
    %v651 = vmul.f32 %v649, %v583
    %653 = vrot.lane.b32.xlu0 %v650, 32
    %v654 = vpop.permute.xlu0 %653
    %v656 = vmul.f32 %v649, %v654
    %658 = vrot.lane.b32.xlu0 %v656, 32
    %v659 = vpop.permute.xlu0 %658
    %v661 = vadd.f32 %v651, %v659
    %v662 = vtanh.pop %v661
    %664 = vrot.lane.b32.xlu0 %v662, 32
    %v665 = vpop.permute.xlu0 %664
    %v667 = vmul.f32 %v649, %v665
    %669 = vrot.lane.b32.xlu0 %v667, 64
    %v670 = vpop.permute.xlu0 %669
    %672 = vst.msk [vmem:[#allocation3 + $0x6] sm:$0x1] %vm203, %v670
    %v673 = vld [vmem:[#allocation2 + $0x7] sm:$0x1]
    %v674 = vpack.c.bf16 %v667, %v667
    %676 = vrot.lane.b32.xlu0 %v674, 64
    %v677 = vpop.permute.xlu0 %676
    %v679 = vsel %vm62, %v677, 0
    %681 = vmatprep.subr.bf16.mxu0 0
    %682 = vmatpush1.bf16.msra.mxu0 %v123
    %683 = vmatprep.subr.bf16.mxu0 0
    %684 = vmatpush1.bf16.msra.mxu0 %v124
    %685 = vmatprep.subr.bf16.mxu0 0
    %686 = vmatpush1.bf16.msra.mxu0 0
    %687 = vmatprep.subr.bf16.mxu0 0
    %688 = vmatpush1.bf16.msra.mxu0 0
    %689 = vmatprep.subr.bf16.mxu0 0
    %690 = vmatpush1.bf16.msra.mxu0 0
    %691 = vmatprep.subr.bf16.mxu0 0
    %692 = vmatpush1.bf16.msra.mxu0 0
    %693 = vmatprep.subr.bf16.mxu0 0
    %694 = vmatpush1.bf16.msra.mxu0 0
    %695 = vmatprep.subr.bf16.mxu0 0
    %696 = vmatpush1.bf16.msra.mxu0 0
    %697 = vmatprep.subr.bf16.mxu0 0
    %698 = vmatpush1.bf16.msra.mxu0 0
    %699 = vmatprep.subr.bf16.mxu0 0
    %700 = vmatpush1.bf16.msra.mxu0 0
    %701 = vmatprep.subr.bf16.mxu0 0
    %702 = vmatpush1.bf16.msra.mxu0 0
    %703 = vmatprep.subr.bf16.mxu0 0
    %704 = vmatpush1.bf16.msra.mxu0 0
    %705 = vmatprep.subr.bf16.mxu0 0
    %706 = vmatpush1.bf16.msra.mxu0 0
    %707 = vmatprep.subr.bf16.mxu0 0
    %708 = vmatpush1.bf16.msra.mxu0 0
    %709 = vmatprep.subr.bf16.mxu0 0
    %710 = vmatpush1.bf16.msra.mxu0 0
    %711 = vmatprep.subr.bf16.mxu0 0
    %712 = vmatpush1.bf16.msra.mxu0 0
    %713 = vmatprep.mubr.bf16.mxu0 0
    %714 = vmatmul.mubr.bf16.gmra.mrb[0].mxu0 %v679
    %v715 = vpop.f32.mrb[0].mxu0
    %v716 = vadd.f32 0.0, %v715
    %v717 = vpop.f32.mrb[0].mxu0
    %v718 = vpop.f32.mrb[0].mxu0
    %v719 = vpop.f32.mrb[0].mxu0
    %720 = vdwg.mxu0
    %v721 = vadd.f32 %v673, %v716
    %v722 = vxor.u32 %v721, 2147483648
    %v723 = vmul.f32 %v722, 1.442695
    %v724 = vpow.pop %v723
    %v725 = vadd.f32 %v724, 1.0
    %v726 = vrcp.pop %v725
    %v727 = vmul.f32 1.0, %v726
    %v728 = vtanh.pop %v721
    %v729 = vmul.f32 %v727, %v661
    %731 = vrot.lane.b32.xlu0 %v728, 32
    %v732 = vpop.permute.xlu0 %731
    %v734 = vmul.f32 %v727, %v732
    %736 = vrot.lane.b32.xlu0 %v734, 32
    %v737 = vpop.permute.xlu0 %736
    %v739 = vadd.f32 %v729, %v737
    %v740 = vtanh.pop %v739
    %742 = vrot.lane.b32.xlu0 %v740, 32
    %v743 = vpop.permute.xlu0 %742
    %v745 = vmul.f32 %v727, %v743
    %747 = vrot.lane.b32.xlu0 %v745, 64
    %v748 = vpop.permute.xlu0 %747
    %750 = vst.msk [vmem:[#allocation3 + $0x7] sm:$0x1] %vm203, %v748
    %751 = vst.msk [vmem:[#allocation5] sm:$0x1] %vm203, %v748
    %753 = vrot.lane.b32.xlu0 %v739, 96
    %v754 = vpop.permute.xlu0 %753
    %756 = vst.msk [vmem:[#allocation7] sm:$0x1] %vm203, %v754
    %v757 = vld [vmem:[#allocation3] sm:$0xff]
    %v758 = vpack.c.bf16 %v757, %v757
    %v759 = vld [vmem:[%s6] sm:$0xf]
    %v760 = vld [vmem:[%s6 + $0x4] sm:$0xf]
    %v761 = vld [vmem:[%s6 + $0x8] sm:$0xf]
    %v762 = vld [vmem:[%s6 + $0xc] sm:$0xf]
    %v763 = vld [vmem:[%s8] sm:$0x1]
    %v765 = vlaneseq
    %v766 = vshrl.u32 %v765, 7
    %v767 = vsub.s32 0, %v766
    %v768 = vrot.slane %v763, %v767
    %v774 = vunpack.c.l.b16 %v759
    %v775 = vunpack.c.l.b16 %v760
    %v776 = vunpack.c.l.b16 %v761
    %v777 = vunpack.c.l.b16 %v762
    %v778 = vpack.c.b16 %v775, %v774
    %v779 = vpack.c.b16 %v777, %v776
    %v783 = vsel %vm62, %v758, 0
    %785 = vmatprep.subr.bf16.mxu0 0
    %786 = vmatpush1.bf16.msra.mxu0 %v778
    %787 = vmatprep.subr.bf16.mxu0 0
    %788 = vmatpush1.bf16.msra.mxu0 %v779
    %789 = vmatprep.subr.bf16.mxu0 0
    %790 = vmatpush1.bf16.msra.mxu0 0
    %791 = vmatprep.subr.bf16.mxu0 0
    %792 = vmatpush1.bf16.msra.mxu0 0
    %793 = vmatprep.subr.bf16.mxu0 0
    %794 = vmatpush1.bf16.msra.mxu0 0
    %795 = vmatprep.subr.bf16.mxu0 0
    %796 = vmatpush1.bf16.msra.mxu0 0
    %797 = vmatprep.subr.bf16.mxu0 0
    %798 = vmatpush1.bf16.msra.mxu0 0
    %799 = vmatprep.subr.bf16.mxu0 0
    %800 = vmatpush1.bf16.msra.mxu0 0
    %801 = vmatprep.subr.bf16.mxu0 0
    %802 = vmatpush1.bf16.msra.mxu0 0
    %803 = vmatprep.subr.bf16.mxu0 0
    %804 = vmatpush1.bf16.msra.mxu0 0
    %805 = vmatprep.subr.bf16.mxu0 0
    %806 = vmatpush1.bf16.msra.mxu0 0
    %807 = vmatprep.subr.bf16.mxu0 0
    %808 = vmatpush1.bf16.msra.mxu0 0
    %809 = vmatprep.subr.bf16.mxu0 0
    %810 = vmatpush1.bf16.msra.mxu0 0
    %811 = vmatprep.subr.bf16.mxu0 0
    %812 = vmatpush1.bf16.msra.mxu0 0
    %813 = vmatprep.subr.bf16.mxu0 0
    %814 = vmatpush1.bf16.msra.mxu0 0
    %815 = vmatprep.subr.bf16.mxu0 0
    %816 = vmatpush1.bf16.msra.mxu0 0
    %817 = vmatprep.mubr.bf16.mxu0 0
    %818 = vmatmul.mubr.bf16.gmra.mrb[0].mxu0 %v783
    %v819 = vpop.f32.mrb[0].mxu0
    %v820 = vadd.f32 %v768, %v819
    %v821 = vpop.f32.mrb[0].mxu0
    %v822 = vpop.f32.mrb[0].mxu0
    %v823 = vpop.f32.mrb[0].mxu0
    %824 = vdwg.mxu0
    %825 = vst [vmem:[#allocation2] sm:$0xff] %v820
    %v826 = vld [vmem:[%s7] sm:$0xf]
    %v827 = vld [vmem:[%s7 + $0x4] sm:$0xf]
    %v828 = vld [vmem:[%s7 + $0x8] sm:$0xf]
    %v829 = vld [vmem:[%s7 + $0xc] sm:$0xf]
    %v830 = vld [vmem:[%s1 + $0x1] sm:$0x1]
    %v831 = vld [vmem:[%s2 + $0x1] sm:$0x1]
    %v832 = vld [vmem:[#allocation2] sm:$0x1]
    %v833 = vpack.c.bf16 %v830, %v830
    %v838 = vunpack.c.l.b16 %v826
    %v839 = vunpack.c.l.b16 %v827
    %v840 = vunpack.c.l.b16 %v828
    %v841 = vunpack.c.l.b16 %v829
    %v842 = vpack.c.b16 %v839, %v838
    %v843 = vpack.c.b16 %v841, %v840
    %v847 = vsel %vm62, %v833, 0
    %849 = vmatprep.subr.bf16.mxu0 0
    %850 = vmatpush1.bf16.msra.mxu0 %v842
    %851 = vmatprep.subr.bf16.mxu0 0
    %852 = vmatpush1.bf16.msra.mxu0 %v843
    %853 = vmatprep.subr.bf16.mxu0 0
    %854 = vmatpush1.bf16.msra.mxu0 0
    %855 = vmatprep.subr.bf16.mxu0 0
    %856 = vmatpush1.bf16.msra.mxu0 0
    %857 = vmatprep.subr.bf16.mxu0 0
    %858 = vmatpush1.bf16.msra.mxu0 0
    %859 = vmatprep.subr.bf16.mxu0 0
    %860 = vmatpush1.bf16.msra.mxu0 0
    %861 = vmatprep.subr.bf16.mxu0 0
    %862 = vmatpush1.bf16.msra.mxu0 0
    %863 = vmatprep.subr.bf16.mxu0 0
    %864 = vmatpush1.bf16.msra.mxu0 0
    %865 = vmatprep.subr.bf16.mxu0 0
    %866 = vmatpush1.bf16.msra.mxu0 0
    %867 = vmatprep.subr.bf16.mxu0 0
    %868 = vmatpush1.bf16.msra.mxu0 0
    %869 = vmatprep.subr.bf16.mxu0 0
    %870 = vmatpush1.bf16.msra.mxu0 0
    %871 = vmatprep.subr.bf16.mxu0 0
    %872 = vmatpush1.bf16.msra.mxu0 0
    %873 = vmatprep.subr.bf16.mxu0 0
    %874 = vmatpush1.bf16.msra.mxu0 0
    %875 = vmatprep.subr.bf16.mxu0 0
    %876 = vmatpush1.bf16.msra.mxu0 0
    %877 = vmatprep.subr.bf16.mxu0 0
    %878 = vmatpush1.bf16.msra.mxu0 0
    %879 = vmatprep.subr.bf16.mxu0 0
    %880 = vmatpush1.bf16.msra.mxu0 0
    %881 = vmatprep.mubr.bf16.mxu0 0
    %882 = vmatmul.mubr.bf16.gmra.mrb[0].mxu0 %v847
    %v883 = vpop.f32.mrb[0].mxu0
    %v884 = vadd.f32 0.0, %v883
    %v885 = vpop.f32.mrb[0].mxu0
    %v886 = vpop.f32.mrb[0].mxu0
    %v887 = vpop.f32.mrb[0].mxu0
    %888 = vdwg.mxu0
    %v889 = vadd.f32 %v832, %v884
    %v890 = vxor.u32 %v889, 2147483648
    %v891 = vmul.f32 %v890, 1.442695
    %v892 = vpow.pop %v891
    %v893 = vadd.f32 %v892, 1.0
    %v894 = vrcp.pop %v893
    %v895 = vmul.f32 1.0, %v894
    %v896 = vtanh.pop %v889
    %898 = vrot.lane.b32.xlu0 %v831, 32
    %v899 = vpop.permute.xlu0 %898
    %v901 = vmul.f32 %v895, %v899
    %903 = vrot.lane.b32.xlu0 %v896, 32
    %v904 = vpop.permute.xlu0 %903
    %v906 = vmul.f32 %v895, %v904
    %908 = vrot.lane.b32.xlu0 %v906, 32
    %v909 = vpop.permute.xlu0 %908
    %v911 = vadd.f32 %v901, %v909
    %v912 = vtanh.pop %v911
    %914 = vrot.lane.b32.xlu0 %v912, 32
    %v915 = vpop.permute.xlu0 %914
    %v917 = vmul.f32 %v895, %v915
    %919 = vrot.lane.b32.xlu0 %v917, 64
    %v920 = vpop.permute.xlu0 %919
    %922 = vst.msk [vmem:[#allocation3] sm:$0x1] %vm203, %v920
    %v923 = vld [vmem:[#allocation2 + $0x1] sm:$0x1]
    %v924 = vpack.c.bf16 %v917, %v917
    %926 = vrot.lane.b32.xlu0 %v924, 64
    %v927 = vpop.permute.xlu0 %926
    %v929 = vsel %vm62, %v927, 0
    %931 = vmatprep.subr.bf16.mxu0 0
    %932 = vmatpush1.bf16.msra.mxu0 %v842
    %933 = vmatprep.subr.bf16.mxu0 0
    %934 = vmatpush1.bf16.msra.mxu0 %v843
    %935 = vmatprep.subr.bf16.mxu0 0
    %936 = vmatpush1.bf16.msra.mxu0 0
    %937 = vmatprep.subr.bf16.mxu0 0
    %938 = vmatpush1.bf16.msra.mxu0 0
    %939 = vmatprep.subr.bf16.mxu0 0
    %940 = vmatpush1.bf16.msra.mxu0 0
    %941 = vmatprep.subr.bf16.mxu0 0
    %942 = vmatpush1.bf16.msra.mxu0 0
    %943 = vmatprep.subr.bf16.mxu0 0
    %944 = vmatpush1.bf16.msra.mxu0 0
    %945 = vmatprep.subr.bf16.mxu0 0
    %946 = vmatpush1.bf16.msra.mxu0 0
    %947 = vmatprep.subr.bf16.mxu0 0
    %948 = vmatpush1.bf16.msra.mxu0 0
    %949 = vmatprep.subr.bf16.mxu0 0
    %950 = vmatpush1.bf16.msra.mxu0 0
    %951 = vmatprep.subr.bf16.mxu0 0
    %952 = vmatpush1.bf16.msra.mxu0 0
    %953 = vmatprep.subr.bf16.mxu0 0
    %954 = vmatpush1.bf16.msra.mxu0 0
    %955 = vmatprep.subr.bf16.mxu0 0
    %956 = vmatpush1.bf16.msra.mxu0 0
    %957 = vmatprep.subr.bf16.mxu0 0
    %958 = vmatpush1.bf16.msra.mxu0 0
    %959 = vmatprep.subr.bf16.mxu0 0
    %960 = vmatpush1.bf16.msra.mxu0 0
    %961 = vmatprep.subr.bf16.mxu0 0
    %962 = vmatpush1.bf16.msra.mxu0 0
    %963 = vmatprep.mubr.bf16.mxu0 0
    %964 = vmatmul.mubr.bf16.gmra.mrb[0].mxu0 %v929
    %v965 = vpop.f32.mrb[0].mxu0
    %v966 = vadd.f32 0.0, %v965
    %v967 = vpop.f32.mrb[0].mxu0
    %v968 = vpop.f32.mrb[0].mxu0
    %v969 = vpop.f32.mrb[0].mxu0
    %970 = vdwg.mxu0
    %v971 = vadd.f32 %v923, %v966
    %v972 = vxor.u32 %v971, 2147483648
    %v973 = vmul.f32 %v972, 1.442695
    %v974 = vpow.pop %v973
    %v975 = vadd.f32 %v974, 1.0
    %v976 = vrcp.pop %v975
    %v977 = vmul.f32 1.0, %v976
    %v978 = vtanh.pop %v971
    %v979 = vmul.f32 %v977, %v911
    %981 = vrot.lane.b32.xlu0 %v978, 32
    %v982 = vpop.permute.xlu0 %981
    %v984 = vmul.f32 %v977, %v982
    %986 = vrot.lane.b32.xlu0 %v984, 32
    %v987 = vpop.permute.xlu0 %986
    %v989 = vadd.f32 %v979, %v987
    %v990 = vtanh.pop %v989
    %992 = vrot.lane.b32.xlu0 %v990, 32
    %v993 = vpop.permute.xlu0 %992
    %v995 = vmul.f32 %v977, %v993
    %997 = vrot.lane.b32.xlu0 %v995, 64
    %v998 = vpop.permute.xlu0 %997
    %1000 = vst.msk [vmem:[#allocation3 + $0x1] sm:$0x1] %vm203, %v998
    %v1001 = vld [vmem:[#allocation2 + $0x2] sm:$0x1]
    %v1002 = vpack.c.bf16 %v995, %v995
    %1004 = vrot.lane.b32.xlu0 %v1002, 64
    %v1005 = vpop.permute.xlu0 %1004
    %v1007 = vsel %vm62, %v1005, 0
    %1009 = vmatprep.subr.bf16.mxu0 0
    %1010 = vmatpush1.bf16.msra.mxu0 %v842
    %1011 = vmatprep.subr.bf16.mxu0 0
    %1012 = vmatpush1.bf16.msra.mxu0 %v843
    %1013 = vmatprep.subr.bf16.mxu0 0
    %1014 = vmatpush1.bf16.msra.mxu0 0
    %1015 = vmatprep.subr.bf16.mxu0 0
    %1016 = vmatpush1.bf16.msra.mxu0 0
    %1017 = vmatprep.subr.bf16.mxu0 0
    %1018 = vmatpush1.bf16.msra.mxu0 0
    %1019 = vmatprep.subr.bf16.mxu0 0
    %1020 = vmatpush1.bf16.msra.mxu0 0
    %1021 = vmatprep.subr.bf16.mxu0 0
    %1022 = vmatpush1.bf16.msra.mxu0 0
    %1023 = vmatprep.subr.bf16.mxu0 0
    %1024 = vmatpush1.bf16.msra.mxu0 0
    %1025 = vmatprep.subr.bf16.mxu0 0
    %1026 = vmatpush1.bf16.msra.mxu0 0
    %1027 = vmatprep.subr.bf16.mxu0 0
    %1028 = vmatpush1.bf16.msra.mxu0 0
    %1029 = vmatprep.subr.bf16.mxu0 0
    %1030 = vmatpush1.bf16.msra.mxu0 0
    %1031 = vmatprep.subr.bf16.mxu0 0
    %1032 = vmatpush1.bf16.msra.mxu0 0
    %1033 = vmatprep.subr.bf16.mxu0 0
    %1034 = vmatpush1.bf16.msra.mxu0 0
    %1035 = vmatprep.subr.bf16.mxu0 0
    %1036 = vmatpush1.bf16.msra.mxu0 0
    %1037 = vmatprep.subr.bf16.mxu0 0
    %1038 = vmatpush1.bf16.msra.mxu0 0
    %1039 = vmatprep.subr.bf16.mxu0 0
    %1040 = vmatpush1.bf16.msra.mxu0 0
    %1041 = vmatprep.mubr.bf16.mxu0 0
    %1042 = vmatmul.mubr.bf16.gmra.mrb[0].mxu0 %v1007
    %v1043 = vpop.f32.mrb[0].mxu0
    %v1044 = vadd.f32 0.0, %v1043
    %v1045 = vpop.f32.mrb[0].mxu0
    %v1046 = vpop.f32.mrb[0].mxu0
    %v1047 = vpop.f32.mrb[0].mxu0
    %1048 = vdwg.mxu0
    %v1049 = vadd.f32 %v1001, %v1044
    %v1050 = vxor.u32 %v1049, 2147483648
    %v1051 = vmul.f32 %v1050, 1.442695
    %v1052 = vpow.pop %v1051
    %v1053 = vadd.f32 %v1052, 1.0
    %v1054 = vrcp.pop %v1053
    %v1055 = vmul.f32 1.0, %v1054
    %v1056 = vtanh.pop %v1049
    %v1057 = vmul.f32 %v1055, %v989
    %1059 = vrot.lane.b32.xlu0 %v1056, 32
    %v1060 = vpop.permute.xlu0 %1059
    %v1062 = vmul.f32 %v1055, %v1060
    %1064 = vrot.lane.b32.xlu0 %v1062, 32
    %v1065 = vpop.permute.xlu0 %1064
    %v1067 = vadd.f32 %v1057, %v1065
    %v1068 = vtanh.pop %v1067
    %1070 = vrot.lane.b32.xlu0 %v1068, 32
    %v1071 = vpop.permute.xlu0 %1070
    %v1073 = vmul.f32 %v1055, %v1071
    %1075 = vrot.lane.b32.xlu0 %v1073, 64
    %v1076 = vpop.permute.xlu0 %1075
    %1078 = vst.msk [vmem:[#allocation3 + $0x2] sm:$0x1] %vm203, %v1076
    %v1079 = vld [vmem:[#allocation2 + $0x3] sm:$0x1]
    %v1080 = vpack.c.bf16 %v1073, %v1073
    %1082 = vrot.lane.b32.xlu0 %v1080, 64
    %v1083 = vpop.permute.xlu0 %1082
    %v1085 = vsel %vm62, %v1083, 0
    %1087 = vmatprep.subr.bf16.mxu0 0
    %1088 = vmatpush1.bf16.msra.mxu0 %v842
    %1089 = vmatprep.subr.bf16.mxu0 0
    %1090 = vmatpush1.bf16.msra.mxu0 %v843
    %1091 = vmatprep.subr.bf16.mxu0 0
    %1092 = vmatpush1.bf16.msra.mxu0 0
    %1093 = vmatprep.subr.bf16.mxu0 0
    %1094 = vmatpush1.bf16.msra.mxu0 0
    %1095 = vmatprep.subr.bf16.mxu0 0
    %1096 = vmatpush1.bf16.msra.mxu0 0
    %1097 = vmatprep.subr.bf16.mxu0 0
    %1098 = vmatpush1.bf16.msra.mxu0 0
    %1099 = vmatprep.subr.bf16.mxu0 0
    %1100 = vmatpush1.bf16.msra.mxu0 0
    %1101 = vmatprep.subr.bf16.mxu0 0
    %1102 = vmatpush1.bf16.msra.mxu0 0
    %1103 = vmatprep.subr.bf16.mxu0 0
    %1104 = vmatpush1.bf16.msra.mxu0 0
    %1105 = vmatprep.subr.bf16.mxu0 0
    %1106 = vmatpush1.bf16.msra.mxu0 0
    %1107 = vmatprep.subr.bf16.mxu0 0
    %1108 = vmatpush1.bf16.msra.mxu0 0
    %1109 = vmatprep.subr.bf16.mxu0 0
    %1110 = vmatpush1.bf16.msra.mxu0 0
    %1111 = vmatprep.subr.bf16.mxu0 0
    %1112 = vmatpush1.bf16.msra.mxu0 0
    %1113 = vmatprep.subr.bf16.mxu0 0
    %1114 = vmatpush1.bf16.msra.mxu0 0
    %1115 = vmatprep.subr.bf16.mxu0 0
    %1116 = vmatpush1.bf16.msra.mxu0 0
    %1117 = vmatprep.subr.bf16.mxu0 0
    %1118 = vmatpush1.bf16.msra.mxu0 0
    %1119 = vmatprep.mubr.bf16.mxu0 0
    %1120 = vmatmul.mubr.bf16.gmra.mrb[0].mxu0 %v1085
    %v1121 = vpop.f32.mrb[0].mxu0
    %v1122 = vadd.f32 0.0, %v1121
    %v1123 = vpop.f32.mrb[0].mxu0
    %v1124 = vpop.f32.mrb[0].mxu0
    %v1125 = vpop.f32.mrb[0].mxu0
    %1126 = vdwg.mxu0
    %v1127 = vadd.f32 %v1079, %v1122
    %v1128 = vxor.u32 %v1127, 2147483648
    %v1129 = vmul.f32 %v1128, 1.442695
    %v1130 = vpow.pop %v1129
    %v1131 = vadd.f32 %v1130, 1.0
    %v1132 = vrcp.pop %v1131
    %v1133 = vmul.f32 1.0, %v1132
    %v1134 = vtanh.pop %v1127
    %v1135 = vmul.f32 %v1133, %v1067
    %1137 = vrot.lane.b32.xlu0 %v1134, 32
    %v1138 = vpop.permute.xlu0 %1137
    %v1140 = vmul.f32 %v1133, %v1138
    %1142 = vrot.lane.b32.xlu0 %v1140, 32
    %v1143 = vpop.permute.xlu0 %1142
    %v1145 = vadd.f32 %v1135, %v1143
    %v1146 = vtanh.pop %v1145
    %1148 = vrot.lane.b32.xlu0 %v1146, 32
    %v1149 = vpop.permute.xlu0 %1148
    %v1151 = vmul.f32 %v1133, %v1149
    %1153 = vrot.lane.b32.xlu0 %v1151, 64
    %v1154 = vpop.permute.xlu0 %1153
    %1156 = vst.msk [vmem:[#allocation3 + $0x3] sm:$0x1] %vm203, %v1154
    %v1157 = vld [vmem:[#allocation2 + $0x4] sm:$0x1]
    %v1158 = vpack.c.bf16 %v1151, %v1151
    %1160 = vrot.lane.b32.xlu0 %v1158, 64
    %v1161 = vpop.permute.xlu0 %1160
    %v1163 = vsel %vm62, %v1161, 0
    %1165 = vmatprep.subr.bf16.mxu0 0
    %1166 = vmatpush1.bf16.msra.mxu0 %v842
    %1167 = vmatprep.subr.bf16.mxu0 0
    %1168 = vmatpush1.bf16.msra.mxu0 %v843
    %1169 = vmatprep.subr.bf16.mxu0 0
    %1170 = vmatpush1.bf16.msra.mxu0 0
    %1171 = vmatprep.subr.bf16.mxu0 0
    %1172 = vmatpush1.bf16.msra.mxu0 0
    %1173 = vmatprep.subr.bf16.mxu0 0
    %1174 = vmatpush1.bf16.msra.mxu0 0
    %1175 = vmatprep.subr.bf16.mxu0 0
    %1176 = vmatpush1.bf16.msra.mxu0 0
    %1177 = vmatprep.subr.bf16.mxu0 0
    %1178 = vmatpush1.bf16.msra.mxu0 0
    %1179 = vmatprep.subr.bf16.mxu0 0
    %1180 = vmatpush1.bf16.msra.mxu0 0
    %1181 = vmatprep.subr.bf16.mxu0 0
    %1182 = vmatpush1.bf16.msra.mxu0 0
    %1183 = vmatprep.subr.bf16.mxu0 0
    %1184 = vmatpush1.bf16.msra.mxu0 0
    %1185 = vmatprep.subr.bf16.mxu0 0
    %1186 = vmatpush1.bf16.msra.mxu0 0
    %1187 = vmatprep.subr.bf16.mxu0 0
    %1188 = vmatpush1.bf16.msra.mxu0 0
    %1189 = vmatprep.subr.bf16.mxu0 0
    %1190 = vmatpush1.bf16.msra.mxu0 0
    %1191 = vmatprep.subr.bf16.mxu0 0
    %1192 = vmatpush1.bf16.msra.mxu0 0
    %1193 = vmatprep.subr.bf16.mxu0 0
    %1194 = vmatpush1.bf16.msra.mxu0 0
    %1195 = vmatprep.subr.bf16.mxu0 0
    %1196 = vmatpush1.bf16.msra.mxu0 0
    %1197 = vmatprep.mubr.bf16.mxu0 0
    %1198 = vmatmul.mubr.bf16.gmra.mrb[0].mxu0 %v1163
    %v1199 = vpop.f32.mrb[0].mxu0
    %v1200 = vadd.f32 0.0, %v1199
    %v1201 = vpop.f32.mrb[0].mxu0
    %v1202 = vpop.f32.mrb[0].mxu0
    %v1203 = vpop.f32.mrb[0].mxu0
    %1204 = vdwg.mxu0
    %v1205 = vadd.f32 %v1157, %v1200
    %v1206 = vxor.u32 %v1205, 2147483648
    %v1207 = vmul.f32 %v1206, 1.442695
    %v1208 = vpow.pop %v1207
    %v1209 = vadd.f32 %v1208, 1.0
    %v1210 = vrcp.pop %v1209
    %v1211 = vmul.f32 1.0, %v1210
    %v1212 = vtanh.pop %v1205
    %v1213 = vmul.f32 %v1211, %v1145
    %1215 = vrot.lane.b32.xlu0 %v1212, 32
    %v1216 = vpop.permute.xlu0 %1215
    %v1218 = vmul.f32 %v1211, %v1216
    %1220 = vrot.lane.b32.xlu0 %v1218, 32
    %v1221 = vpop.permute.xlu0 %1220
    %v1223 = vadd.f32 %v1213, %v1221
    %v1224 = vtanh.pop %v1223
    %1226 = vrot.lane.b32.xlu0 %v1224, 32
    %v1227 = vpop.permute.xlu0 %1226
    %v1229 = vmul.f32 %v1211, %v1227
    %1231 = vrot.lane.b32.xlu0 %v1229, 64
    %v1232 = vpop.permute.xlu0 %1231
    %1234 = vst.msk [vmem:[#allocation3 + $0x4] sm:$0x1] %vm203, %v1232
    %v1235 = vld [vmem:[#allocation2 + $0x5] sm:$0x1]
    %v1236 = vpack.c.bf16 %v1229, %v1229
    %1238 = vrot.lane.b32.xlu0 %v1236, 64
    %v1239 = vpop.permute.xlu0 %1238
    %v1241 = vsel %vm62, %v1239, 0
    %1243 = vmatprep.subr.bf16.mxu0 0
    %1244 = vmatpush1.bf16.msra.mxu0 %v842
    %1245 = vmatprep.subr.bf16.mxu0 0
    %1246 = vmatpush1.bf16.msra.mxu0 %v843
    %1247 = vmatprep.subr.bf16.mxu0 0
    %1248 = vmatpush1.bf16.msra.mxu0 0
    %1249 = vmatprep.subr.bf16.mxu0 0
    %1250 = vmatpush1.bf16.msra.mxu0 0
    %1251 = vmatprep.subr.bf16.mxu0 0
    %1252 = vmatpush1.bf16.msra.mxu0 0
    %1253 = vmatprep.subr.bf16.mxu0 0
    %1254 = vmatpush1.bf16.msra.mxu0 0
    %1255 = vmatprep.subr.bf16.mxu0 0
    %1256 = vmatpush1.bf16.msra.mxu0 0
    %1257 = vmatprep.subr.bf16.mxu0 0
    %1258 = vmatpush1.bf16.msra.mxu0 0
    %1259 = vmatprep.subr.bf16.mxu0 0
    %1260 = vmatpush1.bf16.msra.mxu0 0
    %1261 = vmatprep.subr.bf16.mxu0 0
    %1262 = vmatpush1.bf16.msra.mxu0 0
    %1263 = vmatprep.subr.bf16.mxu0 0
    %1264 = vmatpush1.bf16.msra.mxu0 0
    %1265 = vmatprep.subr.bf16.mxu0 0
    %1266 = vmatpush1.bf16.msra.mxu0 0
    %1267 = vmatprep.subr.bf16.mxu0 0
    %1268 = vmatpush1.bf16.msra.mxu0 0
    %1269 = vmatprep.subr.bf16.mxu0 0
    %1270 = vmatpush1.bf16.msra.mxu0 0
    %1271 = vmatprep.subr.bf16.mxu0 0
    %1272 = vmatpush1.bf16.msra.mxu0 0
    %1273 = vmatprep.subr.bf16.mxu0 0
    %1274 = vmatpush1.bf16.msra.mxu0 0
    %1275 = vmatprep.mubr.bf16.mxu0 0
    %1276 = vmatmul.mubr.bf16.gmra.mrb[0].mxu0 %v1241
    %v1277 = vpop.f32.mrb[0].mxu0
    %v1278 = vadd.f32 0.0, %v1277
    %v1279 = vpop.f32.mrb[0].mxu0
    %v1280 = vpop.f32.mrb[0].mxu0
    %v1281 = vpop.f32.mrb[0].mxu0
    %1282 = vdwg.mxu0
    %v1283 = vadd.f32 %v1235, %v1278
    %v1284 = vxor.u32 %v1283, 2147483648
    %v1285 = vmul.f32 %v1284, 1.442695
    %v1286 = vpow.pop %v1285
    %v1287 = vadd.f32 %v1286, 1.0
    %v1288 = vrcp.pop %v1287
    %v1289 = vmul.f32 1.0, %v1288
    %v1290 = vtanh.pop %v1283
    %v1291 = vmul.f32 %v1289, %v1223
    %1293 = vrot.lane.b32.xlu0 %v1290, 32
    %v1294 = vpop.permute.xlu0 %1293
    %v1296 = vmul.f32 %v1289, %v1294
    %1298 = vrot.lane.b32.xlu0 %v1296, 32
    %v1299 = vpop.permute.xlu0 %1298
    %v1301 = vadd.f32 %v1291, %v1299
    %v1302 = vtanh.pop %v1301
    %1304 = vrot.lane.b32.xlu0 %v1302, 32
    %v1305 = vpop.permute.xlu0 %1304
    %v1307 = vmul.f32 %v1289, %v1305
    %1309 = vrot.lane.b32.xlu0 %v1307, 64
    %v1310 = vpop.permute.xlu0 %1309
    %1312 = vst.msk [vmem:[#allocation3 + $0x5] sm:$0x1] %vm203, %v1310
    %v1313 = vld [vmem:[#allocation2 + $0x6] sm:$0x1]
    %v1314 = vpack.c.bf16 %v1307, %v1307
    %1316 = vrot.lane.b32.xlu0 %v1314, 64
    %v1317 = vpop.permute.xlu0 %1316
    %v1319 = vsel %vm62, %v1317, 0
    %1321 = vmatprep.subr.bf16.mxu0 0
    %1322 = vmatpush1.bf16.msra.mxu0 %v842
    %1323 = vmatprep.subr.bf16.mxu0 0
    %1324 = vmatpush1.bf16.msra.mxu0 %v843
    %1325 = vmatprep.subr.bf16.mxu0 0
    %1326 = vmatpush1.bf16.msra.mxu0 0
    %1327 = vmatprep.subr.bf16.mxu0 0
    %1328 = vmatpush1.bf16.msra.mxu0 0
    %1329 = vmatprep.subr.bf16.mxu0 0
    %1330 = vmatpush1.bf16.msra.mxu0 0
    %1331 = vmatprep.subr.bf16.mxu0 0
    %1332 = vmatpush1.bf16.msra.mxu0 0
    %1333 = vmatprep.subr.bf16.mxu0 0
    %1334 = vmatpush1.bf16.msra.mxu0 0
    %1335 = vmatprep.subr.bf16.mxu0 0
    %1336 = vmatpush1.bf16.msra.mxu0 0
    %1337 = vmatprep.subr.bf16.mxu0 0
    %1338 = vmatpush1.bf16.msra.mxu0 0
    %1339 = vmatprep.subr.bf16.mxu0 0
    %1340 = vmatpush1.bf16.msra.mxu0 0
    %1341 = vmatprep.subr.bf16.mxu0 0
    %1342 = vmatpush1.bf16.msra.mxu0 0
    %1343 = vmatprep.subr.bf16.mxu0 0
    %1344 = vmatpush1.bf16.msra.mxu0 0
    %1345 = vmatprep.subr.bf16.mxu0 0
    %1346 = vmatpush1.bf16.msra.mxu0 0
    %1347 = vmatprep.subr.bf16.mxu0 0
    %1348 = vmatpush1.bf16.msra.mxu0 0
    %1349 = vmatprep.subr.bf16.mxu0 0
    %1350 = vmatpush1.bf16.msra.mxu0 0
    %1351 = vmatprep.subr.bf16.mxu0 0
    %1352 = vmatpush1.bf16.msra.mxu0 0
    %1353 = vmatprep.mubr.bf16.mxu0 0
    %1354 = vmatmul.mubr.bf16.gmra.mrb[0].mxu0 %v1319
    %v1355 = vpop.f32.mrb[0].mxu0
    %v1356 = vadd.f32 0.0, %v1355
    %v1357 = vpop.f32.mrb[0].mxu0
    %v1358 = vpop.f32.mrb[0].mxu0
    %v1359 = vpop.f32.mrb[0].mxu0
    %1360 = vdwg.mxu0
    %v1361 = vadd.f32 %v1313, %v1356
    %v1362 = vxor.u32 %v1361, 2147483648
    %v1363 = vmul.f32 %v1362, 1.442695
    %v1364 = vpow.pop %v1363
    %v1365 = vadd.f32 %v1364, 1.0
    %v1366 = vrcp.pop %v1365
    %v1367 = vmul.f32 1.0, %v1366
    %v1368 = vtanh.pop %v1361
    %v1369 = vmul.f32 %v1367, %v1301
    %1371 = vrot.lane.b32.xlu0 %v1368, 32
    %v1372 = vpop.permute.xlu0 %1371
    %v1374 = vmul.f32 %v1367, %v1372
    %1376 = vrot.lane.b32.xlu0 %v1374, 32
    %v1377 = vpop.permute.xlu0 %1376
    %v1379 = vadd.f32 %v1369, %v1377
    %v1380 = vtanh.pop %v1379
    %1382 = vrot.lane.b32.xlu0 %v1380, 32
    %v1383 = vpop.permute.xlu0 %1382
    %v1385 = vmul.f32 %v1367, %v1383
    %1387 = vrot.lane.b32.xlu0 %v1385, 64
    %v1388 = vpop.permute.xlu0 %1387
    %1390 = vst.msk [vmem:[#allocation3 + $0x6] sm:$0x1] %vm203, %v1388
    %v1391 = vld [vmem:[#allocation2 + $0x7] sm:$0x1]
    %v1392 = vpack.c.bf16 %v1385, %v1385
    %1394 = vrot.lane.b32.xlu0 %v1392, 64
    %v1395 = vpop.permute.xlu0 %1394
    %v1397 = vsel %vm62, %v1395, 0
    %1399 = vmatprep.subr.bf16.mxu0 0
    %1400 = vmatpush1.bf16.msra.mxu0 %v842
    %1401 = vmatprep.subr.bf16.mxu0 0
    %1402 = vmatpush1.bf16.msra.mxu0 %v843
    %1403 = vmatprep.subr.bf16.mxu0 0
    %1404 = vmatpush1.bf16.msra.mxu0 0
    %1405 = vmatprep.subr.bf16.mxu0 0
    %1406 = vmatpush1.bf16.msra.mxu0 0
    %1407 = vmatprep.subr.bf16.mxu0 0
    %1408 = vmatpush1.bf16.msra.mxu0 0
    %1409 = vmatprep.subr.bf16.mxu0 0
    %1410 = vmatpush1.bf16.msra.mxu0 0
    %1411 = vmatprep.subr.bf16.mxu0 0
    %1412 = vmatpush1.bf16.msra.mxu0 0
    %1413 = vmatprep.subr.bf16.mxu0 0
    %1414 = vmatpush1.bf16.msra.mxu0 0
    %1415 = vmatprep.subr.bf16.mxu0 0
    %1416 = vmatpush1.bf16.msra.mxu0 0
    %1417 = vmatprep.subr.bf16.mxu0 0
    %1418 = vmatpush1.bf16.msra.mxu0 0
    %1419 = vmatprep.subr.bf16.mxu0 0
    %1420 = vmatpush1.bf16.msra.mxu0 0
    %1421 = vmatprep.subr.bf16.mxu0 0
    %1422 = vmatpush1.bf16.msra.mxu0 0
    %1423 = vmatprep.subr.bf16.mxu0 0
    %1424 = vmatpush1.bf16.msra.mxu0 0
    %1425 = vmatprep.subr.bf16.mxu0 0
    %1426 = vmatpush1.bf16.msra.mxu0 0
    %1427 = vmatprep.subr.bf16.mxu0 0
    %1428 = vmatpush1.bf16.msra.mxu0 0
    %1429 = vmatprep.subr.bf16.mxu0 0
    %1430 = vmatpush1.bf16.msra.mxu0 0
    %1431 = vmatprep.mubr.bf16.mxu0 0
    %1432 = vmatmul.mubr.bf16.gmra.mrb[0].mxu0 %v1397
    %v1433 = vpop.f32.mrb[0].mxu0
    %v1434 = vadd.f32 0.0, %v1433
    %v1435 = vpop.f32.mrb[0].mxu0
    %v1436 = vpop.f32.mrb[0].mxu0
    %v1437 = vpop.f32.mrb[0].mxu0
    %1438 = vdwg.mxu0
    %v1439 = vadd.f32 %v1391, %v1434
    %v1440 = vxor.u32 %v1439, 2147483648
    %v1441 = vmul.f32 %v1440, 1.442695
    %v1442 = vpow.pop %v1441
    %v1443 = vadd.f32 %v1442, 1.0
    %v1444 = vrcp.pop %v1443
    %v1445 = vmul.f32 1.0, %v1444
    %v1446 = vtanh.pop %v1439
    %v1447 = vmul.f32 %v1445, %v1379
    %1449 = vrot.lane.b32.xlu0 %v1446, 32
    %v1450 = vpop.permute.xlu0 %1449
    %v1452 = vmul.f32 %v1445, %v1450
    %1454 = vrot.lane.b32.xlu0 %v1452, 32
    %v1455 = vpop.permute.xlu0 %1454
    %v1457 = vadd.f32 %v1447, %v1455
    %v1458 = vtanh.pop %v1457
    %1460 = vrot.lane.b32.xlu0 %v1458, 32
    %v1461 = vpop.permute.xlu0 %1460
    %v1463 = vmul.f32 %v1445, %v1461
    %1465 = vrot.lane.b32.xlu0 %v1463, 64
    %v1466 = vpop.permute.xlu0 %1465
    %1468 = vst.msk [vmem:[#allocation3 + $0x7] sm:$0x1] %vm203, %v1466
    %1469 = vst.msk [vmem:[#allocation5 + $0x1] sm:$0x1] %vm203, %v1466
    %1471 = vrot.lane.b32.xlu0 %v1457, 96
    %v1472 = vpop.permute.xlu0 %1471
    %1474 = vst.msk [vmem:[#allocation7 + $0x1] sm:$0x1] %vm203, %v1472
    // Predicated region
    $region38: #{text_encoder_forward.1} parent=1 // pred_check
      _
    $region39: #{text_encoder_forward.1} parent=1 // pred_check_branch
      %1476 = sbr.rel (0) target = $region41
    $region40: #{text_encoder_forward.1} parent=1 // pred_region
      %s1478 = ssub.s32 128, 128
      %1479 = vsyncadd [#allocation4], %s1478
      %s1481 = sshll.u32 [#allocation3], 4
      %s1482 = int_to_ptr.vmem [resolvable:$true] %s1481
      %1484 = dma.vmem_to_hbm [thread:$0]  %s1482, 128, %s9, [#allocation4]
    $region41: #{text_encoder_forward.1} parent=1 // pred_fallthru
      _
    // Predicated region
    $region42: #{text_encoder_forward.1} parent=1 // pred_check
      _
    $region43: #{text_encoder_forward.1} parent=1 // pred_check_branch
      %1486 = sbr.rel (0) target = $region45
    $region44: #{text_encoder_forward.1} parent=1 // pred_region
      %s1488 = ssub.s32 32, 32
      %1489 = vsyncadd [#allocation6], %s1488
      %s1491 = sshll.u32 [#allocation5], 4
      %s1492 = int_to_ptr.vmem [resolvable:$true] %s1491
      %1494 = dma.vmem_to_hbm [thread:$0]  %s1492, 32, %s10, [#allocation6]
    $region45: #{text_encoder_forward.1} parent=1 // pred_fallthru
      _
    // Predicated region
    $region46: #{text_encoder_forward.1} parent=1 // pred_check
      _
    $region47: #{text_encoder_forward.1} parent=1 // pred_check_branch
      %1496 = sbr.rel (0) target = $region49
    $region48: #{text_encoder_forward.1} parent=1 // pred_region
      %s1498 = ssub.s32 32, 32
      %1499 = vsyncadd [#allocation6], %s1498
      %s1501 = sshll.u32 [#allocation7], 4
      %s1502 = int_to_ptr.vmem [resolvable:$true] %s1501
      %1504 = dma.vmem_to_hbm [thread:$0]  %s1502, 32, %s11, [#allocation6]
    $region49: #{text_encoder_forward.1} parent=1 // pred_fallthru
      _
    // Predicated region
    $region50: #{text_encoder_forward.1} parent=1 // pred_check
      _
    $region51: #{text_encoder_forward.1} parent=1 // pred_check_branch
      %1506 = sbr.rel (0) target = $region53
    $region52: #{text_encoder_forward.1} parent=1 // pred_region
      %1507 = dma.done [#allocation4], 128
    $region53: #{text_encoder_forward.1} parent=1 // pred_fallthru
      _
    // Predicated region
    $region54: #{text_encoder_forward.1} parent=1 // pred_check
      _
    $region55: #{text_encoder_forward.1} parent=1 // pred_check_branch
      %1509 = sbr.rel (0) target = $region57
    $region56: #{text_encoder_forward.1} parent=1 // pred_region
      %1510 = dma.done [#allocation6], 32
    $region57: #{text_encoder_forward.1} parent=1 // pred_fallthru
      _
    // Predicated region
    $region58: #{text_encoder_forward.1} parent=1 // pred_check
      _
    $region59: #{text_encoder_forward.1} parent=1 // pred_check_branch
      %1512 = sbr.rel (0) target = $region61
    $region60: #{text_encoder_forward.1} parent=1 // pred_region
      %1513 = dma.done [#allocation6], 32
    $region61: #{text_encoder_forward.1} parent=1 // pred_fallthru
      _
    %1514 = vsyncpa [#allocation4], 1
    %1515 = vsyncpa [#allocation6], 1

</llo_original>
